<compile_context>
chip_gen: v5e
topology: v5e:2x2
jax: 0.10.0
libtpu: 0.0.40
codegen_flags: <defaults>
</compile_context>

<pallas_src>
import jax
import jax.numpy as jnp
from jax import lax
from jax.experimental import pallas as pl
from jax.experimental.pallas import tpu as pltpu

IN_FEATURES = 784
OUT_FEATURES = 784


def _linear_kernel(x_ref, w_ref, b_ref, o_ref):
    # x_ref : (TM, 784)   VMEM, f32 (cast to bf16 in-register for the MXU)
    # w_ref : (784, 784)  VMEM, bf16, PyTorch layout (out_features, in_features)
    # b_ref : (1, 784)    VMEM, f32
    # o_ref : (TM, 784)   VMEM, f32
    x_bf16 = x_ref[...].astype(jnp.bfloat16)
    # Contract x axis 1 with weight axis 1 (i.e. x @ W^T) without transposing.
    acc = lax.dot_general(
        x_bf16,
        w_ref[...],
        dimension_numbers=(((1,), (1,)), ((), ())),
        preferred_element_type=jnp.float32,
    )
    o_ref[...] = (acc + b_ref[...]).astype(o_ref.dtype)


def prepare_params(weight, bias):
    """One-time parameter prep (do NOT call per forward).

    weight: (784, 784) f32, PyTorch nn.Linear layout (out_features, in_features)
    bias:   (784,) f32
    Returns (weight_bf16 (784,784), bias_row f32 (1,784)).
    """
    w_bf16 = weight.astype(jnp.bfloat16)          # layout unchanged: (out, in)
    b_row = bias.reshape(1, OUT_FEATURES).astype(jnp.float32)
    return w_bf16, b_row


def _round_up(x, m):
    return ((x + m - 1) // m) * m


def foobar_forward(x, weight_bf16, bias_row, *, block_m=256):
    """Equivalent of FooBar.forward.

    x:           any shape with prod(trailing dims) == 784 (e.g. (N,1,28,28))
    weight_bf16: (784, 784) bf16 from prepare_params (PyTorch (out,in) layout)
    bias_row:    (1, 784) f32 from prepare_params
    returns      (B, 784) float32
    """
    x2d = x.reshape(-1, IN_FEATURES).astype(jnp.float32)
    B = x2d.shape[0]

    # Batch tile: multiple of 8 sublanes; 256 feeds the 256x256 MXU on v6e/v7x
    # and is fine (2x128) on v5e. Shrink for tiny batches.
    tm = min(block_m, _round_up(B, 8))
    grid = (pl.cdiv(B, tm),)

    cost = pl.CostEstimate(
        flops=2 * B * IN_FEATURES * OUT_FEATURES,
        transcendentals=0,
        bytes_accessed=(
            B * IN_FEATURES * 4            # x (f32)
            + OUT_FEATURES * IN_FEATURES * 2  # weight (bf16)
            + OUT_FEATURES * 4             # bias (f32)
            + B * OUT_FEATURES * 4         # output (f32)
        ),
    )

    out = pl.pallas_call(
        _linear_kernel,
        out_shape=jax.ShapeDtypeStruct((B, OUT_FEATURES), jnp.float32),
        grid_spec=pltpu.PrefetchScalarGridSpec(
            num_scalar_prefetch=0,
            grid=grid,
            in_specs=[
                # x: tiled over batch -> pipelined HBM->VMEM DMA per step.
                pl.BlockSpec((tm, IN_FEATURES), lambda i: (i, 0)),
                # weight: same block every step -> stays resident in VMEM.
                pl.BlockSpec((OUT_FEATURES, IN_FEATURES), lambda i: (0, 0)),
                # bias: resident.
                pl.BlockSpec((1, OUT_FEATURES), lambda i: (0, 0)),
            ],
            out_specs=pl.BlockSpec((tm, OUT_FEATURES), lambda i: (i, 0)),
        ),
        compiler_params=pltpu.CompilerParams(
            # Batch tiles are independent -> shard grid across TensorCores.
            dimension_semantics=("parallel",),
        ),
        cost_estimate=cost,
    )(x2d, weight_bf16, bias_row)
    return out


def init_params(key):
    """Deterministic nn.Linear(784, 784)-shaped params (kaiming-uniform-like)."""
    kw, kb = jax.random.split(key)
    bound = 1.0 / jnp.sqrt(jnp.float32(IN_FEATURES))
    weight = jax.random.uniform(
        kw, (OUT_FEATURES, IN_FEATURES), jnp.float32, -bound, bound
    )
    bias = jax.random.uniform(kb, (OUT_FEATURES,), jnp.float32, -bound, bound)
    return weight, bias


if __name__ == "__main__":
    key = jax.random.PRNGKey(0)
    k_x, k_p = jax.random.split(key)

    # Small MNIST-like input: batch=2, 1x28x28 -> flattens to (2, 784)
    x = jax.random.normal(k_x, (2, 1, 28, 28), jnp.float32)
    weight, bias = init_params(k_p)

    # One-time param prep (bf16 weight, no transpose).
    w_prep, b_prep = prepare_params(weight, bias)

    y = foobar_forward(x, w_prep, b_prep)
    jax.block_until_ready(y)

    # Correctness check against plain-JAX f32 reference of the PyTorch semantics.
    # Tolerance loosened for the bf16 MXU inputs (f32 accumulation).
    ref = x.reshape(-1, IN_FEATURES) @ weight.T + bias
    assert y.shape == (2, OUT_FEATURES)
    max_err = float(jnp.max(jnp.abs(y - ref)))
    assert jnp.allclose(y, ref, atol=5e-2, rtol=5e-2), f"max_abs_err={max_err}"

    print("KERNEL_OK")
</pallas_src>

<mosaic_0001>
module attributes {stable_mosaic.version = 11 : i64} {
  func.func @_linear_kernel(%arg0: i32, %arg1: memref<8x784xf32, #tpu.memory_space<vmem>>, %arg2: memref<784x784xbf16, #tpu.memory_space<vmem>>, %arg3: memref<1x784xf32, #tpu.memory_space<vmem>>, %arg4: memref<8x784xf32, #tpu.memory_space<vmem>>) attributes {dimension_semantics = [#tpu.dimension_semantics<parallel>], iteration_bounds = array<i64: 1>, scalar_prefetch = 0 : i64, scratch_operands = 0 : i64, tpu.core_type = #tpu.core_type<tc>, window_params = [{transform_indices = @transform_0, window_bounds = array<i64: 8, 784>}, {pipeline_mode = #tpu.pipeline_mode<synchronous>, transform_indices = @transform_1, window_bounds = array<i64: 784, 784>}, {pipeline_mode = #tpu.pipeline_mode<synchronous>, transform_indices = @transform_2, window_bounds = array<i64: 1, 784>}, {transform_indices = @transform_3, window_bounds = array<i64: 8, 784>}]} {
    %c0 = arith.constant 0 : index
    %c0_0 = arith.constant 0 : index
    %0 = vector.load %arg1[%c0, %c0_0] : memref<8x784xf32, #tpu.memory_space<vmem>>, vector<8x784xf32>
    %1 = arith.truncf %0 : vector<8x784xf32> to vector<8x784xbf16>
    %c0_1 = arith.constant 0 : index
    %c0_2 = arith.constant 0 : index
    %2 = vector.load %arg2[%c0_1, %c0_2] : memref<784x784xbf16, #tpu.memory_space<vmem>>, vector<784x784xbf16>
    %cst = arith.constant dense<0.000000e+00> : vector<8x784xf32>
    %3 = tpu.matmul %1, %2, %cst {dimension_numbers = #tpu.dot_dimension_numbers<[1], [1], [0], [0], [0, 0, 1, 0], [], []>} : vector<8x784xbf16>, vector<784x784xbf16>, vector<8x784xf32> -> vector<8x784xf32>
    %c0_3 = arith.constant 0 : index
    %c0_4 = arith.constant 0 : index
    %4 = vector.load %arg3[%c0_3, %c0_4] : memref<1x784xf32, #tpu.memory_space<vmem>>, vector<1x784xf32>
    %5 = vector.broadcast %4 : vector<1x784xf32> to vector<8x784xf32>
    %6 = arith.addf %3, %5 : vector<8x784xf32>
    %c0_5 = arith.constant 0 : index
    %c0_6 = arith.constant 0 : index
    %7 = vector.load %arg4[%c0_5, %c0_6] : memref<8x784xf32, #tpu.memory_space<vmem>>, vector<8x784xf32>
    tpu.vector_store %arg4[%c0_5, %c0_6], %6 {strides = array<i32>} : memref<8x784xf32, #tpu.memory_space<vmem>>, vector<8x784xf32>,
    return
  }
  func.func @transform_0(%arg0: i32) -> (i32, i32) {
    %c0_i32 = arith.constant 0 : i32
    %c0_i32_0 = arith.constant 0 : i32
    return %arg0, %c0_i32 : i32, i32
  }
  func.func @transform_1(%arg0: i32) -> (i32, i32) {
    %c0_i32 = arith.constant 0 : i32
    %c0_i32_0 = arith.constant 0 : i32
    %c0_i32_1 = arith.constant 0 : i32
    return %c0_i32, %c0_i32_0 : i32, i32
  }
  func.func @transform_2(%arg0: i32) -> (i32, i32) {
    %c0_i32 = arith.constant 0 : i32
    %c0_i32_0 = arith.constant 0 : i32
    %c0_i32_1 = arith.constant 0 : i32
    return %c0_i32, %c0_i32_0 : i32, i32
  }
  func.func @transform_3(%arg0: i32) -> (i32, i32) {
    %c0_i32 = arith.constant 0 : i32
    %c0_i32_0 = arith.constant 0 : i32
    return %arg0, %c0_i32 : i32, i32
  }
}

</mosaic_0001>

<llo_original>
// kernel: tpu_custom_call.1
$region0: #{tpu_custom_call.1}
  #allocation0 [shape = 'u32[]', space=smem, size = 0x4, offset = 0x4, fixed_abs, tag = 'smem constant byte address 0x4 - core index']
  #allocation1 [shape = 'u32[72,128]{1,0:T(1,128)}', space=vmem, size = 0x9000, scoped, tag = 'internal scratch']
  %s0 = inlined_call_operand.hbm [shape: f32[2,784], index: 0, kind: input, shape index: {}]
  %s1 = inlined_call_operand.hbm [shape: bf16[784,784], index: 1, kind: input, shape index: {}]
  %s2 = inlined_call_operand.hbm [shape: f32[1,784], index: 2, kind: input, shape index: {}]
  %s3 = inlined_call_operand.hbm [shape: f32[2,784], index: 3, kind: output, shape index: {}]
  %s4 = sld [smem:[#allocation0]]
  $region34: #{tpu_custom_call.1} parent=0
    _
  %s6 = ssub.s32 1, %s4
  %s7 = scalar_select 0, %s6, %s4
  $region1: #{tpu_custom_call.1} parent=0
    #allocation2 [shape = 'u8[28672]{0}', space=vmem, size = 0x7000, scoped, tag = 'input window, operand 0, single buffered']
    #allocation3 [shape = 's32[1]{0}', space=sflag, size = 0x4, scoped, tag = 'scoped memory for tpu_custom_call.1']
    #allocation4 [shape = 's32[1]{0}', space=sflag, size = 0x4, scoped, tag = 'scoped memory for tpu_custom_call.1']
    #allocation5 [shape = 'u8[1404928]{0}', space=vmem, size = 0x157000, scoped, tag = 'input window, operand 1, single buffered']
    #allocation6 [shape = 's32[1]{0}', space=sflag, size = 0x4, scoped, tag = 'scoped memory for tpu_custom_call.1']
    #allocation7 [shape = 'u8[3584]{0}', space=vmem, size = 0x1000, scoped, tag = 'input window, operand 2, single buffered']
    #allocation8 [shape = 'u8[28672]{0}', space=vmem, size = 0x7000, scoped, tag = 'output window, operand 0, single buffered']
    %8 = vsyncpa [#allocation3], 0
    %9 = vsyncpa [#allocation6], 0
    %10 = vsyncpa [#allocation4], 0
    // Predicated region
    $region2: #{tpu_custom_call.1} parent=1 // pred_check
      _
    $region3: #{tpu_custom_call.1} parent=1 // pred_check_branch
      %12 = sbr.rel (0) target = $region5
    $region4: #{tpu_custom_call.1} parent=1 // pred_region
      %14 = vsyncadd [#allocation3], 672
      %s15 = sshll.u32 %s0, 4
      %s16 = int_to_ptr.hbm [resolvable:$true] %s15
      %s17 = sshll.u32 [#allocation2], 4
      %s18 = int_to_ptr.vmem [resolvable:$true] %s17
      %23 = dma.hbm_to_vmem [thread:$0]  %s16, 224, %s18, [#allocation3], 224, 224, 14
    $region5: #{tpu_custom_call.1} parent=1 // pred_fallthru
      _
    // Predicated region
    $region6: #{tpu_custom_call.1} parent=1 // pred_check
      _
    $region7: #{tpu_custom_call.1} parent=1 // pred_check_branch
      %25 = sbr.rel (0) target = $region9
    $region8: #{tpu_custom_call.1} parent=1 // pred_region
      %27 = vsyncadd [#allocation6], 0
      %s28 = sshll.u32 %s1, 4
      %s29 = int_to_ptr.hbm [resolvable:$true] %s28
      %s30 = sshll.u32 [#allocation5], 4
      %s31 = int_to_ptr.vmem [resolvable:$true] %s30
      %36 = dma.hbm_to_vmem [thread:$0]  %s29, 43904, %s31, [#allocation6], 448, 448, 28
    $region9: #{tpu_custom_call.1} parent=1 // pred_fallthru
      _
    // Predicated region
    $region10: #{tpu_custom_call.1} parent=1 // pred_check
      _
    $region11: #{tpu_custom_call.1} parent=1 // pred_check_branch
      %38 = sbr.rel (0) target = $region13
    $region12: #{tpu_custom_call.1} parent=1 // pred_region
      %40 = vsyncadd [#allocation6], 0
      %s42 = sshll.u32 %s2, 4
      %s43 = int_to_ptr.hbm [resolvable:$true] %s42
      %s44 = sshll.u32 [#allocation7], 4
      %s45 = int_to_ptr.vmem [resolvable:$true] %s44
      %47 = dma.hbm_to_vmem [thread:$0]  %s43, 112, %s45, [#allocation6]
    $region13: #{tpu_custom_call.1} parent=1 // pred_fallthru
      _
    // Predicated region
    $region14: #{tpu_custom_call.1} parent=1 // pred_check
      _
    $region15: #{tpu_custom_call.1} parent=1 // pred_check_branch
      %49 = sbr.rel (0) target = $region17
    $region16: #{tpu_custom_call.1} parent=1 // pred_region
      %51 = dma.done [#allocation3], 896
    $region17: #{tpu_custom_call.1} parent=1 // pred_fallthru
      _
    // Predicated region
    $region18: #{tpu_custom_call.1} parent=1 // pred_check
      _
    $region19: #{tpu_custom_call.1} parent=1 // pred_check_branch
      %53 = sbr.rel (0) target = $region21
    $region20: #{tpu_custom_call.1} parent=1 // pred_region
      %55 = dma.done [#allocation6], 43904
    $region21: #{tpu_custom_call.1} parent=1 // pred_fallthru
      _
    // Predicated region
    $region22: #{tpu_custom_call.1} parent=1 // pred_check
      _
    $region23: #{tpu_custom_call.1} parent=1 // pred_check_branch
      %57 = sbr.rel (0) target = $region25
    $region24: #{tpu_custom_call.1} parent=1 // pred_region
      %59 = dma.done [#allocation6], 112
    $region25: #{tpu_custom_call.1} parent=1 // pred_fallthru
      _
    %v61 = vld [vmem:[#allocation2] sm:$0xff]
    %v62 = vld [vmem:[#allocation2 + $0x8] sm:$0x3f]
    %v63 = vld [vmem:[#allocation2 + $0xe] sm:$0xff]
    %v64 = vld [vmem:[#allocation2 + $0x16] sm:$0x3f]
    %v65 = vld [vmem:[#allocation2 + $0x1c] sm:$0xff]
    %v66 = vld [vmem:[#allocation2 + $0x24] sm:$0x3f]
    %v67 = vld [vmem:[#allocation2 + $0x2a] sm:$0xff]
    %v68 = vld [vmem:[#allocation2 + $0x32] sm:$0x3f]
    %77 = vst [vmem:[#allocation1] ss:$4 sm:$0xff] %v61
    %s78 = scalar_lea.vmem [#allocation1], 1
    %79 = vst [vmem:[%s78] ss:$4 sm:$0xff] %v63
    %s80 = scalar_lea.vmem [#allocation1], 2
    %81 = vst [vmem:[%s80] ss:$4 sm:$0xff] %v65
    %s82 = scalar_lea.vmem [#allocation1], 3
    %83 = vst [vmem:[%s82] ss:$4 sm:$0xff] %v67
    %s84 = scalar_lea.vmem [#allocation1], 32
    %85 = vst [vmem:[%s84] ss:$4 sm:$0xff] %v62
    %s86 = scalar_lea.vmem [#allocation1], 33
    %87 = vst [vmem:[%s86] ss:$4 sm:$0xff] %v64
    %s88 = scalar_lea.vmem [#allocation1], 34
    %89 = vst [vmem:[%s88] ss:$4 sm:$0xff] %v66
    %s90 = scalar_lea.vmem [#allocation1], 35
    %91 = vst [vmem:[%s90] ss:$4 sm:$0xff] %v68
    %v92 = vld.sshfl [vmem:[#allocation1] sm:$0xff pattern:$0x73625140]
    %v93 = vld.sshfl [vmem:[#allocation1 + $0x8] sm:$0xff pattern:$0x73625140]
    %v94 = vld.sshfl [vmem:[#allocation1 + $0x10] sm:$0xff pattern:$0x73625140]
    %v95 = vld.sshfl [vmem:[#allocation1 + $0x18] sm:$0xff pattern:$0x73625140]
    %v96 = vld.sshfl [vmem:[#allocation1 + $0x20] sm:$0xff pattern:$0x73625140]
    %v97 = vld.sshfl [vmem:[#allocation1 + $0x28] sm:$0xff pattern:$0x73625140]
    %v98 = vld.sshfl [vmem:[#allocation1 + $0x30] sm:$0xff pattern:$0x73625140]
    %v106 = vpack.c.bf16 %v92, %v92
    %v107 = vpack.c.bf16 %v93, %v93
    %v108 = vpack.c.bf16 %v94, %v94
    %v109 = vpack.c.bf16 %v95, %v95
    %v110 = vpack.c.bf16 %v96, %v96
    %v111 = vpack.c.bf16 %v97, %v97
    %v112 = vpack.c.bf16 %v98, %v98
    %v113 = vld [vmem:[#allocation5] sm:$0xff]
    %v114 = vld [vmem:[#allocation5 + $0x8] sm:$0xff]
    %v115 = vld [vmem:[#allocation5 + $0x10] sm:$0xff]
    %v116 = vld [vmem:[#allocation5 + $0x18] sm:$0xf]
    %v117 = vld [vmem:[#allocation5 + $0x1c] sm:$0xff]
    %v118 = vld [vmem:[#allocation5 + $0x24] sm:$0xff]
    %v119 = vld [vmem:[#allocation5 + $0x2c] sm:$0xff]
    %v120 = vld [vmem:[#allocation5 + $0x34] sm:$0xf]
    %v121 = vld [vmem:[#allocation5 + $0x38] sm:$0xff]
    %v122 = vld [vmem:[#allocation5 + $0x40] sm:$0xff]
    %v123 = vld [vmem:[#allocation5 + $0x48] sm:$0xff]
    %v124 = vld [vmem:[#allocation5 + $0x50] sm:$0xf]
    %v125 = vld [vmem:[#allocation5 + $0x54] sm:$0xff]
    %v126 = vld [vmem:[#allocation5 + $0x5c] sm:$0xff]
    %v127 = vld [vmem:[#allocation5 + $0x64] sm:$0xff]
    %v128 = vld [vmem:[#allocation5 + $0x6c] sm:$0xf]
    %v129 = vld [vmem:[#allocation5 + $0x70] sm:$0xff]
    %v130 = vld [vmem:[#allocation5 + $0x78] sm:$0xff]
    %v131 = vld [vmem:[#allocation5 + $0x80] sm:$0xff]
    %v132 = vld [vmem:[#allocation5 + $0x88] sm:$0xf]
    %v133 = vld [vmem:[#allocation5 + $0x8c] sm:$0xff]
    %v134 = vld [vmem:[#allocation5 + $0x94] sm:$0xff]
    %v135 = vld [vmem:[#allocation5 + $0x9c] sm:$0xff]
    %v136 = vld [vmem:[#allocation5 + $0xa4] sm:$0xf]
    %v137 = vld [vmem:[#allocation5 + $0xa8] sm:$0xff]
    %v138 = vld [vmem:[#allocation5 + $0xb0] sm:$0xff]
    %v139 = vld [vmem:[#allocation5 + $0xb8] sm:$0xff]
    %v140 = vld [vmem:[#allocation5 + $0xc0] sm:$0xf]
    %v141 = vld [vmem:[#allocation5 + $0xc4] sm:$0xff]
    %v142 = vld [vmem:[#allocation5 + $0xcc] sm:$0xff]
    %v143 = vld [vmem:[#allocation5 + $0xd4] sm:$0xff]
    %v144 = vld [vmem:[#allocation5 + $0xdc] sm:$0xf]
    %v145 = vld [vmem:[#allocation5 + $0xe0] sm:$0xff]
    %v146 = vld [vmem:[#allocation5 + $0xe8] sm:$0xff]
    %v147 = vld [vmem:[#allocation5 + $0xf0] sm:$0xff]
    %v148 = vld [vmem:[#allocation5 + $0xf8] sm:$0xf]
    %v149 = vld [vmem:[#allocation5 + $0xfc] sm:$0xff]
    %v150 = vld [vmem:[#allocation5 + $0x104] sm:$0xff]
    %v151 = vld [vmem:[#allocation5 + $0x10c] sm:$0xff]
    %v152 = vld [vmem:[#allocation5 + $0x114] sm:$0xf]
    %v153 = vld [vmem:[#allocation5 + $0x118] sm:$0xff]
    %v154 = vld [vmem:[#allocation5 + $0x120] sm:$0xff]
    %v155 = vld [vmem:[#allocation5 + $0x128] sm:$0xff]
    %v156 = vld [vmem:[#allocation5 + $0x130] sm:$0xf]
    %v157 = vld [vmem:[#allocation5 + $0x134] sm:$0xff]
    %v158 = vld [vmem:[#allocation5 + $0x13c] sm:$0xff]
    %v159 = vld [vmem:[#allocation5 + $0x144] sm:$0xff]
    %v160 = vld [vmem:[#allocation5 + $0x14c] sm:$0xf]
    %v161 = vld [vmem:[#allocation5 + $0x150] sm:$0xff]
    %v162 = vld [vmem:[#allocation5 + $0x158] sm:$0xff]
    %v163 = vld [vmem:[#allocation5 + $0x160] sm:$0xff]
    %v164 = vld [vmem:[#allocation5 + $0x168] sm:$0xf]
    %v165 = vld [vmem:[#allocation5 + $0x16c] sm:$0xff]
    %v166 = vld [vmem:[#allocation5 + $0x174] sm:$0xff]
    %v167 = vld [vmem:[#allocation5 + $0x17c] sm:$0xff]
    %v168 = vld [vmem:[#allocation5 + $0x184] sm:$0xf]
    %v169 = vld [vmem:[#allocation5 + $0x188] sm:$0xff]
    %v170 = vld [vmem:[#allocation5 + $0x190] sm:$0xff]
    %v171 = vld [vmem:[#allocation5 + $0x198] sm:$0xff]
    %v172 = vld [vmem:[#allocation5 + $0x1a0] sm:$0xf]
    %v173 = vld [vmem:[#allocation5 + $0x1a4] sm:$0xff]
    %v174 = vld [vmem:[#allocation5 + $0x1ac] sm:$0xff]
    %v175 = vld [vmem:[#allocation5 + $0x1b4] sm:$0xff]
    %v176 = vld [vmem:[#allocation5 + $0x1bc] sm:$0xf]
    %v177 = vld [vmem:[#allocation5 + $0x1c0] sm:$0xff]
    %v178 = vld [vmem:[#allocation5 + $0x1c8] sm:$0xff]
    %v179 = vld [vmem:[#allocation5 + $0x1d0] sm:$0xff]
    %v180 = vld [vmem:[#allocation5 + $0x1d8] sm:$0xf]
    %v181 = vld [vmem:[#allocation5 + $0x1dc] sm:$0xff]
    %v182 = vld [vmem:[#allocation5 + $0x1e4] sm:$0xff]
    %v183 = vld [vmem:[#allocation5 + $0x1ec] sm:$0xff]
    %v184 = vld [vmem:[#allocation5 + $0x1f4] sm:$0xf]
    %v185 = vld [vmem:[#allocation5 + $0x1f8] sm:$0xff]
    %v186 = vld [vmem:[#allocation5 + $0x200] sm:$0xff]
    %v187 = vld [vmem:[#allocation5 + $0x208] sm:$0xff]
    %v188 = vld [vmem:[#allocation5 + $0x210] sm:$0xf]
    %v189 = vld [vmem:[#allocation5 + $0x214] sm:$0xff]
    %v190 = vld [vmem:[#allocation5 + $0x21c] sm:$0xff]
    %v191 = vld [vmem:[#allocation5 + $0x224] sm:$0xff]
    %v192 = vld [vmem:[#allocation5 + $0x22c] sm:$0xf]
    %v193 = vld [vmem:[#allocation5 + $0x230] sm:$0xff]
    %v194 = vld [vmem:[#allocation5 + $0x238] sm:$0xff]
    %v195 = vld [vmem:[#allocation5 + $0x240] sm:$0xff]
    %v196 = vld [vmem:[#allocation5 + $0x248] sm:$0xf]
    %v197 = vld [vmem:[#allocation5 + $0x24c] sm:$0xff]
    %v198 = vld [vmem:[#allocation5 + $0x254] sm:$0xff]
    %v199 = vld [vmem:[#allocation5 + $0x25c] sm:$0xff]
    %v200 = vld [vmem:[#allocation5 + $0x264] sm:$0xf]
    %v201 = vld [vmem:[#allocation5 + $0x268] sm:$0xff]
    %v202 = vld [vmem:[#allocation5 + $0x270] sm:$0xff]
    %v203 = vld [vmem:[#allocation5 + $0x278] sm:$0xff]
    %v204 = vld [vmem:[#allocation5 + $0x280] sm:$0xf]
    %v205 = vld [vmem:[#allocation5 + $0x284] sm:$0xff]
    %v206 = vld [vmem:[#allocation5 + $0x28c] sm:$0xff]
    %v207 = vld [vmem:[#allocation5 + $0x294] sm:$0xff]
    %v208 = vld [vmem:[#allocation5 + $0x29c] sm:$0xf]
    %v209 = vld [vmem:[#allocation5 + $0x2a0] sm:$0xff]
    %v210 = vld [vmem:[#allocation5 + $0x2a8] sm:$0xff]
    %v211 = vld [vmem:[#allocation5 + $0x2b0] sm:$0xff]
    %v212 = vld [vmem:[#allocation5 + $0x2b8] sm:$0xf]
    %v213 = vld [vmem:[#allocation5 + $0x2bc] sm:$0xff]
    %v214 = vld [vmem:[#allocation5 + $0x2c4] sm:$0xff]
    %v215 = vld [vmem:[#allocation5 + $0x2cc] sm:$0xff]
    %v216 = vld [vmem:[#allocation5 + $0x2d4] sm:$0xf]
    %v217 = vld [vmem:[#allocation5 + $0x2d8] sm:$0xff]
    %v218 = vld [vmem:[#allocation5 + $0x2e0] sm:$0xff]
    %v219 = vld [vmem:[#allocation5 + $0x2e8] sm:$0xff]
    %v220 = vld [vmem:[#allocation5 + $0x2f0] sm:$0xf]
    %v221 = vld [vmem:[#allocation5 + $0x2f4] sm:$0xff]
    %v222 = vld [vmem:[#allocation5 + $0x2fc] sm:$0xff]
    %v223 = vld [vmem:[#allocation5 + $0x304] sm:$0xff]
    %v224 = vld [vmem:[#allocation5 + $0x30c] sm:$0xf]
    %v225 = vld [vmem:[#allocation5 + $0x310] sm:$0xff]
    %v226 = vld [vmem:[#allocation5 + $0x318] sm:$0xff]
    %v227 = vld [vmem:[#allocation5 + $0x320] sm:$0xff]
    %v228 = vld [vmem:[#allocation5 + $0x328] sm:$0xf]
    %v229 = vld [vmem:[#allocation5 + $0x32c] sm:$0xff]
    %v230 = vld [vmem:[#allocation5 + $0x334] sm:$0xff]
    %v231 = vld [vmem:[#allocation5 + $0x33c] sm:$0xff]
    %v232 = vld [vmem:[#allocation5 + $0x344] sm:$0xf]
    %v233 = vld [vmem:[#allocation5 + $0x348] sm:$0xff]
    %v234 = vld [vmem:[#allocation5 + $0x350] sm:$0xff]
    %v235 = vld [vmem:[#allocation5 + $0x358] sm:$0xff]
    %v236 = vld [vmem:[#allocation5 + $0x360] sm:$0xf]
    %v237 = vld [vmem:[#allocation5 + $0x364] sm:$0xff]
    %v238 = vld [vmem:[#allocation5 + $0x36c] sm:$0xff]
    %v239 = vld [vmem:[#allocation5 + $0x374] sm:$0xff]
    %v240 = vld [vmem:[#allocation5 + $0x37c] sm:$0xf]
    %v241 = vld [vmem:[#allocation5 + $0x380] sm:$0xff]
    %v242 = vld [vmem:[#allocation5 + $0x388] sm:$0xff]
    %v243 = vld [vmem:[#allocation5 + $0x390] sm:$0xff]
    %v244 = vld [vmem:[#allocation5 + $0x398] sm:$0xf]
    %v245 = vld [vmem:[#allocation5 + $0x39c] sm:$0xff]
    %v246 = vld [vmem:[#allocation5 + $0x3a4] sm:$0xff]
    %v247 = vld [vmem:[#allocation5 + $0x3ac] sm:$0xff]
    %v248 = vld [vmem:[#allocation5 + $0x3b4] sm:$0xf]
    %v249 = vld [vmem:[#allocation5 + $0x3b8] sm:$0xff]
    %v250 = vld [vmem:[#allocation5 + $0x3c0] sm:$0xff]
    %v251 = vld [vmem:[#allocation5 + $0x3c8] sm:$0xff]
    %v252 = vld [vmem:[#allocation5 + $0x3d0] sm:$0xf]
    %v253 = vld [vmem:[#allocation5 + $0x3d4] sm:$0xff]
    %v254 = vld [vmem:[#allocation5 + $0x3dc] sm:$0xff]
    %v255 = vld [vmem:[#allocation5 + $0x3e4] sm:$0xff]
    %v256 = vld [vmem:[#allocation5 + $0x3ec] sm:$0xf]
    %v257 = vld [vmem:[#allocation5 + $0x3f0] sm:$0xff]
    %v258 = vld [vmem:[#allocation5 + $0x3f8] sm:$0xff]
    %v259 = vld [vmem:[#allocation5 + $0x400] sm:$0xff]
    %v260 = vld [vmem:[#allocation5 + $0x408] sm:$0xf]
    %v261 = vld [vmem:[#allocation5 + $0x40c] sm:$0xff]
    %v262 = vld [vmem:[#allocation5 + $0x414] sm:$0xff]
    %v263 = vld [vmem:[#allocation5 + $0x41c] sm:$0xff]
    %v264 = vld [vmem:[#allocation5 + $0x424] sm:$0xf]
    %v265 = vld [vmem:[#allocation5 + $0x428] sm:$0xff]
    %v266 = vld [vmem:[#allocation5 + $0x430] sm:$0xff]
    %v267 = vld [vmem:[#allocation5 + $0x438] sm:$0xff]
    %v268 = vld [vmem:[#allocation5 + $0x440] sm:$0xf]
    %v269 = vld [vmem:[#allocation5 + $0x444] sm:$0xff]
    %v270 = vld [vmem:[#allocation5 + $0x44c] sm:$0xff]
    %v271 = vld [vmem:[#allocation5 + $0x454] sm:$0xff]
    %v272 = vld [vmem:[#allocation5 + $0x45c] sm:$0xf]
    %v273 = vld [vmem:[#allocation5 + $0x460] sm:$0xff]
    %v274 = vld [vmem:[#allocation5 + $0x468] sm:$0xff]
    %v275 = vld [vmem:[#allocation5 + $0x470] sm:$0xff]
    %v276 = vld [vmem:[#allocation5 + $0x478] sm:$0xf]
    %v277 = vld [vmem:[#allocation5 + $0x47c] sm:$0xff]
    %v278 = vld [vmem:[#allocation5 + $0x484] sm:$0xff]
    %v279 = vld [vmem:[#allocation5 + $0x48c] sm:$0xff]
    %v280 = vld [vmem:[#allocation5 + $0x494] sm:$0xf]
    %v281 = vld [vmem:[#allocation5 + $0x498] sm:$0xff]
    %v282 = vld [vmem:[#allocation5 + $0x4a0] sm:$0xff]
    %v283 = vld [vmem:[#allocation5 + $0x4a8] sm:$0xff]
    %v284 = vld [vmem:[#allocation5 + $0x4b0] sm:$0xf]
    %v285 = vld [vmem:[#allocation5 + $0x4b4] sm:$0xff]
    %v286 = vld [vmem:[#allocation5 + $0x4bc] sm:$0xff]
    %v287 = vld [vmem:[#allocation5 + $0x4c4] sm:$0xff]
    %v288 = vld [vmem:[#allocation5 + $0x4cc] sm:$0xf]
    %v289 = vld [vmem:[#allocation5 + $0x4d0] sm:$0xff]
    %v290 = vld [vmem:[#allocation5 + $0x4d8] sm:$0xff]
    %v291 = vld [vmem:[#allocation5 + $0x4e0] sm:$0xff]
    %v292 = vld [vmem:[#allocation5 + $0x4e8] sm:$0xf]
    %v293 = vld [vmem:[#allocation5 + $0x4ec] sm:$0xff]
    %v294 = vld [vmem:[#allocation5 + $0x4f4] sm:$0xff]
    %v295 = vld [vmem:[#allocation5 + $0x4fc] sm:$0xff]
    %v296 = vld [vmem:[#allocation5 + $0x504] sm:$0xf]
    %v297 = vld [vmem:[#allocation5 + $0x508] sm:$0xff]
    %v298 = vld [vmem:[#allocation5 + $0x510] sm:$0xff]
    %v299 = vld [vmem:[#allocation5 + $0x518] sm:$0xff]
    %v300 = vld [vmem:[#allocation5 + $0x520] sm:$0xf]
    %v301 = vld [vmem:[#allocation5 + $0x524] sm:$0xff]
    %v302 = vld [vmem:[#allocation5 + $0x52c] sm:$0xff]
    %v303 = vld [vmem:[#allocation5 + $0x534] sm:$0xff]
    %v304 = vld [vmem:[#allocation5 + $0x53c] sm:$0xf]
    %v305 = vld [vmem:[#allocation5 + $0x540] sm:$0xff]
    %v306 = vld [vmem:[#allocation5 + $0x548] sm:$0xff]
    %v307 = vld [vmem:[#allocation5 + $0x550] sm:$0xff]
    %v308 = vld [vmem:[#allocation5 + $0x558] sm:$0xf]
    %v309 = vld [vmem:[#allocation5 + $0x55c] sm:$0xff]
    %v310 = vld [vmem:[#allocation5 + $0x564] sm:$0xff]
    %v311 = vld [vmem:[#allocation5 + $0x56c] sm:$0xff]
    %v312 = vld [vmem:[#allocation5 + $0x574] sm:$0xf]
    %v313 = vld [vmem:[#allocation5 + $0x578] sm:$0xff]
    %v314 = vld [vmem:[#allocation5 + $0x580] sm:$0xff]
    %v315 = vld [vmem:[#allocation5 + $0x588] sm:$0xff]
    %v316 = vld [vmem:[#allocation5 + $0x590] sm:$0xf]
    %v317 = vld [vmem:[#allocation5 + $0x594] sm:$0xff]
    %v318 = vld [vmem:[#allocation5 + $0x59c] sm:$0xff]
    %v319 = vld [vmem:[#allocation5 + $0x5a4] sm:$0xff]
    %v320 = vld [vmem:[#allocation5 + $0x5ac] sm:$0xf]
    %v321 = vld [vmem:[#allocation5 + $0x5b0] sm:$0xff]
    %v322 = vld [vmem:[#allocation5 + $0x5b8] sm:$0xff]
    %v323 = vld [vmem:[#allocation5 + $0x5c0] sm:$0xff]
    %v324 = vld [vmem:[#allocation5 + $0x5c8] sm:$0xf]
    %v325 = vld [vmem:[#allocation5 + $0x5cc] sm:$0xff]
    %v326 = vld [vmem:[#allocation5 + $0x5d4] sm:$0xff]
    %v327 = vld [vmem:[#allocation5 + $0x5dc] sm:$0xff]
    %v328 = vld [vmem:[#allocation5 + $0x5e4] sm:$0xf]
    %v329 = vld [vmem:[#allocation5 + $0x5e8] sm:$0xff]
    %v330 = vld [vmem:[#allocation5 + $0x5f0] sm:$0xff]
    %v331 = vld [vmem:[#allocation5 + $0x5f8] sm:$0xff]
    %v332 = vld [vmem:[#allocation5 + $0x600] sm:$0xf]
    %v333 = vld [vmem:[#allocation5 + $0x604] sm:$0xff]
    %v334 = vld [vmem:[#allocation5 + $0x60c] sm:$0xff]
    %v335 = vld [vmem:[#allocation5 + $0x614] sm:$0xff]
    %v336 = vld [vmem:[#allocation5 + $0x61c] sm:$0xf]
    %v337 = vld [vmem:[#allocation5 + $0x620] sm:$0xff]
    %v338 = vld [vmem:[#allocation5 + $0x628] sm:$0xff]
    %v339 = vld [vmem:[#allocation5 + $0x630] sm:$0xff]
    %v340 = vld [vmem:[#allocation5 + $0x638] sm:$0xf]
    %v341 = vld [vmem:[#allocation5 + $0x63c] sm:$0xff]
    %v342 = vld [vmem:[#allocation5 + $0x644] sm:$0xff]
    %v343 = vld [vmem:[#allocation5 + $0x64c] sm:$0xff]
    %v344 = vld [vmem:[#allocation5 + $0x654] sm:$0xf]
    %v345 = vld [vmem:[#allocation5 + $0x658] sm:$0xff]
    %v346 = vld [vmem:[#allocation5 + $0x660] sm:$0xff]
    %v347 = vld [vmem:[#allocation5 + $0x668] sm:$0xff]
    %v348 = vld [vmem:[#allocation5 + $0x670] sm:$0xf]
    %v349 = vld [vmem:[#allocation5 + $0x674] sm:$0xff]
    %v350 = vld [vmem:[#allocation5 + $0x67c] sm:$0xff]
    %v351 = vld [vmem:[#allocation5 + $0x684] sm:$0xff]
    %v352 = vld [vmem:[#allocation5 + $0x68c] sm:$0xf]
    %v353 = vld [vmem:[#allocation5 + $0x690] sm:$0xff]
    %v354 = vld [vmem:[#allocation5 + $0x698] sm:$0xff]
    %v355 = vld [vmem:[#allocation5 + $0x6a0] sm:$0xff]
    %v356 = vld [vmem:[#allocation5 + $0x6a8] sm:$0xf]
    %v357 = vld [vmem:[#allocation5 + $0x6ac] sm:$0xff]
    %v358 = vld [vmem:[#allocation5 + $0x6b4] sm:$0xff]
    %v359 = vld [vmem:[#allocation5 + $0x6bc] sm:$0xff]
    %v360 = vld [vmem:[#allocation5 + $0x6c4] sm:$0xf]
    %v361 = vld [vmem:[#allocation5 + $0x6c8] sm:$0xff]
    %v362 = vld [vmem:[#allocation5 + $0x6d0] sm:$0xff]
    %v363 = vld [vmem:[#allocation5 + $0x6d8] sm:$0xff]
    %v364 = vld [vmem:[#allocation5 + $0x6e0] sm:$0xf]
    %v365 = vld [vmem:[#allocation5 + $0x6e4] sm:$0xff]
    %v366 = vld [vmem:[#allocation5 + $0x6ec] sm:$0xff]
    %v367 = vld [vmem:[#allocation5 + $0x6f4] sm:$0xff]
    %v368 = vld [vmem:[#allocation5 + $0x6fc] sm:$0xf]
    %v369 = vld [vmem:[#allocation5 + $0x700] sm:$0xff]
    %v370 = vld [vmem:[#allocation5 + $0x708] sm:$0xff]
    %v371 = vld [vmem:[#allocation5 + $0x710] sm:$0xff]
    %v372 = vld [vmem:[#allocation5 + $0x718] sm:$0xf]
    %v373 = vld [vmem:[#allocation5 + $0x71c] sm:$0xff]
    %v374 = vld [vmem:[#allocation5 + $0x724] sm:$0xff]
    %v375 = vld [vmem:[#allocation5 + $0x72c] sm:$0xff]
    %v376 = vld [vmem:[#allocation5 + $0x734] sm:$0xf]
    %v377 = vld [vmem:[#allocation5 + $0x738] sm:$0xff]
    %v378 = vld [vmem:[#allocation5 + $0x740] sm:$0xff]
    %v379 = vld [vmem:[#allocation5 + $0x748] sm:$0xff]
    %v380 = vld [vmem:[#allocation5 + $0x750] sm:$0xf]
    %v381 = vld [vmem:[#allocation5 + $0x754] sm:$0xff]
    %v382 = vld [vmem:[#allocation5 + $0x75c] sm:$0xff]
    %v383 = vld [vmem:[#allocation5 + $0x764] sm:$0xff]
    %v384 = vld [vmem:[#allocation5 + $0x76c] sm:$0xf]
    %v385 = vld [vmem:[#allocation5 + $0x770] sm:$0xff]
    %v386 = vld [vmem:[#allocation5 + $0x778] sm:$0xff]
    %v387 = vld [vmem:[#allocation5 + $0x780] sm:$0xff]
    %v388 = vld [vmem:[#allocation5 + $0x788] sm:$0xf]
    %v389 = vld [vmem:[#allocation5 + $0x78c] sm:$0xff]
    %v390 = vld [vmem:[#allocation5 + $0x794] sm:$0xff]
    %v391 = vld [vmem:[#allocation5 + $0x79c] sm:$0xff]
    %v392 = vld [vmem:[#allocation5 + $0x7a4] sm:$0xf]
    %v393 = vld [vmem:[#allocation5 + $0x7a8] sm:$0xff]
    %v394 = vld [vmem:[#allocation5 + $0x7b0] sm:$0xff]
    %v395 = vld [vmem:[#allocation5 + $0x7b8] sm:$0xff]
    %v396 = vld [vmem:[#allocation5 + $0x7c0] sm:$0xf]
    %v397 = vld [vmem:[#allocation5 + $0x7c4] sm:$0xff]
    %v398 = vld [vmem:[#allocation5 + $0x7cc] sm:$0xff]
    %v399 = vld [vmem:[#allocation5 + $0x7d4] sm:$0xff]
    %v400 = vld [vmem:[#allocation5 + $0x7dc] sm:$0xf]
    %v401 = vld [vmem:[#allocation5 + $0x7e0] sm:$0xff]
    %v402 = vld [vmem:[#allocation5 + $0x7e8] sm:$0xff]
    %v403 = vld [vmem:[#allocation5 + $0x7f0] sm:$0xff]
    %v404 = vld [vmem:[#allocation5 + $0x7f8] sm:$0xf]
    %v405 = vld [vmem:[#allocation5 + $0x7fc] sm:$0xff]
    %v406 = vld [vmem:[#allocation5 + $0x804] sm:$0xff]
    %v407 = vld [vmem:[#allocation5 + $0x80c] sm:$0xff]
    %v408 = vld [vmem:[#allocation5 + $0x814] sm:$0xf]
    %v409 = vld [vmem:[#allocation5 + $0x818] sm:$0xff]
    %v410 = vld [vmem:[#allocation5 + $0x820] sm:$0xff]
    %v411 = vld [vmem:[#allocation5 + $0x828] sm:$0xff]
    %v412 = vld [vmem:[#allocation5 + $0x830] sm:$0xf]
    %v413 = vld [vmem:[#allocation5 + $0x834] sm:$0xff]
    %v414 = vld [vmem:[#allocation5 + $0x83c] sm:$0xff]
    %v415 = vld [vmem:[#allocation5 + $0x844] sm:$0xff]
    %v416 = vld [vmem:[#allocation5 + $0x84c] sm:$0xf]
    %v417 = vld [vmem:[#allocation5 + $0x850] sm:$0xff]
    %v418 = vld [vmem:[#allocation5 + $0x858] sm:$0xff]
    %v419 = vld [vmem:[#allocation5 + $0x860] sm:$0xff]
    %v420 = vld [vmem:[#allocation5 + $0x868] sm:$0xf]
    %v421 = vld [vmem:[#allocation5 + $0x86c] sm:$0xff]
    %v422 = vld [vmem:[#allocation5 + $0x874] sm:$0xff]
    %v423 = vld [vmem:[#allocation5 + $0x87c] sm:$0xff]
    %v424 = vld [vmem:[#allocation5 + $0x884] sm:$0xf]
    %v425 = vld [vmem:[#allocation5 + $0x888] sm:$0xff]
    %v426 = vld [vmem:[#allocation5 + $0x890] sm:$0xff]
    %v427 = vld [vmem:[#allocation5 + $0x898] sm:$0xff]
    %v428 = vld [vmem:[#allocation5 + $0x8a0] sm:$0xf]
    %v429 = vld [vmem:[#allocation5 + $0x8a4] sm:$0xff]
    %v430 = vld [vmem:[#allocation5 + $0x8ac] sm:$0xff]
    %v431 = vld [vmem:[#allocation5 + $0x8b4] sm:$0xff]
    %v432 = vld [vmem:[#allocation5 + $0x8bc] sm:$0xf]
    %v433 = vld [vmem:[#allocation5 + $0x8c0] sm:$0xff]
    %v434 = vld [vmem:[#allocation5 + $0x8c8] sm:$0xff]
    %v435 = vld [vmem:[#allocation5 + $0x8d0] sm:$0xff]
    %v436 = vld [vmem:[#allocation5 + $0x8d8] sm:$0xf]
    %v437 = vld [vmem:[#allocation5 + $0x8dc] sm:$0xff]
    %v438 = vld [vmem:[#allocation5 + $0x8e4] sm:$0xff]
    %v439 = vld [vmem:[#allocation5 + $0x8ec] sm:$0xff]
    %v440 = vld [vmem:[#allocation5 + $0x8f4] sm:$0xf]
    %v441 = vld [vmem:[#allocation5 + $0x8f8] sm:$0xff]
    %v442 = vld [vmem:[#allocation5 + $0x900] sm:$0xff]
    %v443 = vld [vmem:[#allocation5 + $0x908] sm:$0xff]
    %v444 = vld [vmem:[#allocation5 + $0x910] sm:$0xf]
    %v445 = vld [vmem:[#allocation5 + $0x914] sm:$0xff]
    %v446 = vld [vmem:[#allocation5 + $0x91c] sm:$0xff]
    %v447 = vld [vmem:[#allocation5 + $0x924] sm:$0xff]
    %v448 = vld [vmem:[#allocation5 + $0x92c] sm:$0xf]
    %v449 = vld [vmem:[#allocation5 + $0x930] sm:$0xff]
    %v450 = vld [vmem:[#allocation5 + $0x938] sm:$0xff]
    %v451 = vld [vmem:[#allocation5 + $0x940] sm:$0xff]
    %v452 = vld [vmem:[#allocation5 + $0x948] sm:$0xf]
    %v453 = vld [vmem:[#allocation5 + $0x94c] sm:$0xff]
    %v454 = vld [vmem:[#allocation5 + $0x954] sm:$0xff]
    %v455 = vld [vmem:[#allocation5 + $0x95c] sm:$0xff]
    %v456 = vld [vmem:[#allocation5 + $0x964] sm:$0xf]
    %v457 = vld [vmem:[#allocation5 + $0x968] sm:$0xff]
    %v458 = vld [vmem:[#allocation5 + $0x970] sm:$0xff]
    %v459 = vld [vmem:[#allocation5 + $0x978] sm:$0xff]
    %v460 = vld [vmem:[#allocation5 + $0x980] sm:$0xf]
    %v461 = vld [vmem:[#allocation5 + $0x984] sm:$0xff]
    %v462 = vld [vmem:[#allocation5 + $0x98c] sm:$0xff]
    %v463 = vld [vmem:[#allocation5 + $0x994] sm:$0xff]
    %v464 = vld [vmem:[#allocation5 + $0x99c] sm:$0xf]
    %v465 = vld [vmem:[#allocation5 + $0x9a0] sm:$0xff]
    %v466 = vld [vmem:[#allocation5 + $0x9a8] sm:$0xff]
    %v467 = vld [vmem:[#allocation5 + $0x9b0] sm:$0xff]
    %v468 = vld [vmem:[#allocation5 + $0x9b8] sm:$0xf]
    %v469 = vld [vmem:[#allocation5 + $0x9bc] sm:$0xff]
    %v470 = vld [vmem:[#allocation5 + $0x9c4] sm:$0xff]
    %v471 = vld [vmem:[#allocation5 + $0x9cc] sm:$0xff]
    %v472 = vld [vmem:[#allocation5 + $0x9d4] sm:$0xf]
    %v473 = vld [vmem:[#allocation5 + $0x9d8] sm:$0xff]
    %v474 = vld [vmem:[#allocation5 + $0x9e0] sm:$0xff]
    %v475 = vld [vmem:[#allocation5 + $0x9e8] sm:$0xff]
    %v476 = vld [vmem:[#allocation5 + $0x9f0] sm:$0xf]
    %v477 = vld [vmem:[#allocation5 + $0x9f4] sm:$0xff]
    %v478 = vld [vmem:[#allocation5 + $0x9fc] sm:$0xff]
    %v479 = vld [vmem:[#allocation5 + $0xa04] sm:$0xff]
    %v480 = vld [vmem:[#allocation5 + $0xa0c] sm:$0xf]
    %v481 = vld [vmem:[#allocation5 + $0xa10] sm:$0xff]
    %v482 = vld [vmem:[#allocation5 + $0xa18] sm:$0xff]
    %v483 = vld [vmem:[#allocation5 + $0xa20] sm:$0xff]
    %v484 = vld [vmem:[#allocation5 + $0xa28] sm:$0xf]
    %v485 = vld [vmem:[#allocation5 + $0xa2c] sm:$0xff]
    %v486 = vld [vmem:[#allocation5 + $0xa34] sm:$0xff]
    %v487 = vld [vmem:[#allocation5 + $0xa3c] sm:$0xff]
    %v488 = vld [vmem:[#allocation5 + $0xa44] sm:$0xf]
    %v489 = vld [vmem:[#allocation5 + $0xa48] sm:$0xff]
    %v490 = vld [vmem:[#allocation5 + $0xa50] sm:$0xff]
    %v491 = vld [vmem:[#allocation5 + $0xa58] sm:$0xff]
    %v492 = vld [vmem:[#allocation5 + $0xa60] sm:$0xf]
    %v493 = vld [vmem:[#allocation5 + $0xa64] sm:$0xff]
    %v494 = vld [vmem:[#allocation5 + $0xa6c] sm:$0xff]
    %v495 = vld [vmem:[#allocation5 + $0xa74] sm:$0xff]
    %v496 = vld [vmem:[#allocation5 + $0xa7c] sm:$0xf]
    %v497 = vld [vmem:[#allocation5 + $0xa80] sm:$0xff]
    %v498 = vld [vmem:[#allocation5 + $0xa88] sm:$0xff]
    %v499 = vld [vmem:[#allocation5 + $0xa90] sm:$0xff]
    %v500 = vld [vmem:[#allocation5 + $0xa98] sm:$0xf]
    %v501 = vld [vmem:[#allocation5 + $0xa9c] sm:$0xff]
    %v502 = vld [vmem:[#allocation5 + $0xaa4] sm:$0xff]
    %v503 = vld [vmem:[#allocation5 + $0xaac] sm:$0xff]
    %v504 = vld [vmem:[#allocation5 + $0xab4] sm:$0xf]
    %v505 = vld [vmem:[#allocation7] sm:$0x7f]
    %v507 = vperm.slane %v505, 0
    %v508 = vperm.slane %v505, 1
    %v509 = vperm.slane %v505, 2
    %v510 = vperm.slane %v505, 3
    %v511 = vperm.slane %v505, 4
    %v512 = vperm.slane %v505, 5
    %v513 = vperm.slane %v505, 6
    %v913 = vunpack.c.l.b16 %v113
    %v914 = vunpack.c.h.b16 %v113
    %v915 = vunpack.c.l.b16 %v114
    %v916 = vunpack.c.h.b16 %v114
    %v917 = vunpack.c.l.b16 %v115
    %v918 = vunpack.c.h.b16 %v115
    %v919 = vunpack.c.l.b16 %v116
    %v920 = vunpack.c.l.b16 %v117
    %v921 = vunpack.c.h.b16 %v117
    %v922 = vunpack.c.l.b16 %v118
    %v923 = vunpack.c.h.b16 %v118
    %v924 = vunpack.c.l.b16 %v119
    %v925 = vunpack.c.h.b16 %v119
    %v926 = vunpack.c.l.b16 %v120
    %v927 = vunpack.c.l.b16 %v121
    %v928 = vunpack.c.h.b16 %v121
    %v929 = vunpack.c.l.b16 %v122
    %v930 = vunpack.c.h.b16 %v122
    %v931 = vunpack.c.l.b16 %v123
    %v932 = vunpack.c.h.b16 %v123
    %v933 = vunpack.c.l.b16 %v124
    %v934 = vunpack.c.l.b16 %v125
    %v935 = vunpack.c.h.b16 %v125
    %v936 = vunpack.c.l.b16 %v126
    %v937 = vunpack.c.h.b16 %v126
    %v938 = vunpack.c.l.b16 %v127
    %v939 = vunpack.c.h.b16 %v127
    %v940 = vunpack.c.l.b16 %v128
    %v941 = vunpack.c.l.b16 %v129
    %v942 = vunpack.c.h.b16 %v129
    %v943 = vunpack.c.l.b16 %v130
    %v944 = vunpack.c.h.b16 %v130
    %v945 = vunpack.c.l.b16 %v131
    %v946 = vunpack.c.h.b16 %v131
    %v947 = vunpack.c.l.b16 %v132
    %v948 = vunpack.c.l.b16 %v133
    %v949 = vunpack.c.h.b16 %v133
    %v950 = vunpack.c.l.b16 %v134
    %v951 = vunpack.c.h.b16 %v134
    %v952 = vunpack.c.l.b16 %v135
    %v953 = vunpack.c.h.b16 %v135
    %v954 = vunpack.c.l.b16 %v136
    %v955 = vunpack.c.l.b16 %v137
    %v956 = vunpack.c.h.b16 %v137
    %v957 = vunpack.c.l.b16 %v138
    %v958 = vunpack.c.h.b16 %v138
    %v959 = vunpack.c.l.b16 %v139
    %v960 = vunpack.c.h.b16 %v139
    %v961 = vunpack.c.l.b16 %v140
    %v962 = vunpack.c.l.b16 %v141
    %v963 = vunpack.c.h.b16 %v141
    %v964 = vunpack.c.l.b16 %v142
    %v965 = vunpack.c.h.b16 %v142
    %v966 = vunpack.c.l.b16 %v143
    %v967 = vunpack.c.h.b16 %v143
    %v968 = vunpack.c.l.b16 %v144
    %v969 = vunpack.c.l.b16 %v145
    %v970 = vunpack.c.h.b16 %v145
    %v971 = vunpack.c.l.b16 %v146
    %v972 = vunpack.c.h.b16 %v146
    %v973 = vunpack.c.l.b16 %v147
    %v974 = vunpack.c.h.b16 %v147
    %v975 = vunpack.c.l.b16 %v148
    %v976 = vunpack.c.l.b16 %v149
    %v977 = vunpack.c.h.b16 %v149
    %v978 = vunpack.c.l.b16 %v150
    %v979 = vunpack.c.h.b16 %v150
    %v980 = vunpack.c.l.b16 %v151
    %v981 = vunpack.c.h.b16 %v151
    %v982 = vunpack.c.l.b16 %v152
    %v983 = vunpack.c.l.b16 %v153
    %v984 = vunpack.c.h.b16 %v153
    %v985 = vunpack.c.l.b16 %v154
    %v986 = vunpack.c.h.b16 %v154
    %v987 = vunpack.c.l.b16 %v155
    %v988 = vunpack.c.h.b16 %v155
    %v989 = vunpack.c.l.b16 %v156
    %v990 = vunpack.c.l.b16 %v157
    %v991 = vunpack.c.h.b16 %v157
    %v992 = vunpack.c.l.b16 %v158
    %v993 = vunpack.c.h.b16 %v158
    %v994 = vunpack.c.l.b16 %v159
    %v995 = vunpack.c.h.b16 %v159
    %v996 = vunpack.c.l.b16 %v160
    %v997 = vunpack.c.l.b16 %v161
    %v998 = vunpack.c.h.b16 %v161
    %v999 = vunpack.c.l.b16 %v162
    %v1000 = vunpack.c.h.b16 %v162
    %v1001 = vunpack.c.l.b16 %v163
    %v1002 = vunpack.c.h.b16 %v163
    %v1003 = vunpack.c.l.b16 %v164
    %v1004 = vunpack.c.l.b16 %v165
    %v1005 = vunpack.c.h.b16 %v165
    %v1006 = vunpack.c.l.b16 %v166
    %v1007 = vunpack.c.h.b16 %v166
    %v1008 = vunpack.c.l.b16 %v167
    %v1009 = vunpack.c.h.b16 %v167
    %v1010 = vunpack.c.l.b16 %v168
    %v1011 = vunpack.c.l.b16 %v169
    %v1012 = vunpack.c.h.b16 %v169
    %v1013 = vunpack.c.l.b16 %v170
    %v1014 = vunpack.c.h.b16 %v170
    %v1015 = vunpack.c.l.b16 %v171
    %v1016 = vunpack.c.h.b16 %v171
    %v1017 = vunpack.c.l.b16 %v172
    %v1018 = vunpack.c.l.b16 %v173
    %v1019 = vunpack.c.h.b16 %v173
    %v1020 = vunpack.c.l.b16 %v174
    %v1021 = vunpack.c.h.b16 %v174
    %v1022 = vunpack.c.l.b16 %v175
    %v1023 = vunpack.c.h.b16 %v175
    %v1024 = vunpack.c.l.b16 %v176
    %v1025 = vunpack.c.l.b16 %v177
    %v1026 = vunpack.c.h.b16 %v177
    %v1027 = vunpack.c.l.b16 %v178
    %v1028 = vunpack.c.h.b16 %v178
    %v1029 = vunpack.c.l.b16 %v179
    %v1030 = vunpack.c.h.b16 %v179
    %v1031 = vunpack.c.l.b16 %v180
    %v1032 = vunpack.c.l.b16 %v181
    %v1033 = vunpack.c.h.b16 %v181
    %v1034 = vunpack.c.l.b16 %v182
    %v1035 = vunpack.c.h.b16 %v182
    %v1036 = vunpack.c.l.b16 %v183
    %v1037 = vunpack.c.h.b16 %v183
    %v1038 = vunpack.c.l.b16 %v184
    %v1039 = vunpack.c.l.b16 %v185
    %v1040 = vunpack.c.h.b16 %v185
    %v1041 = vunpack.c.l.b16 %v186
    %v1042 = vunpack.c.h.b16 %v186
    %v1043 = vunpack.c.l.b16 %v187
    %v1044 = vunpack.c.h.b16 %v187
    %v1045 = vunpack.c.l.b16 %v188
    %v1046 = vunpack.c.l.b16 %v189
    %v1047 = vunpack.c.h.b16 %v189
    %v1048 = vunpack.c.l.b16 %v190
    %v1049 = vunpack.c.h.b16 %v190
    %v1050 = vunpack.c.l.b16 %v191
    %v1051 = vunpack.c.h.b16 %v191
    %v1052 = vunpack.c.l.b16 %v192
    %v1053 = vunpack.c.l.b16 %v193
    %v1054 = vunpack.c.h.b16 %v193
    %v1055 = vunpack.c.l.b16 %v194
    %v1056 = vunpack.c.h.b16 %v194
    %v1057 = vunpack.c.l.b16 %v195
    %v1058 = vunpack.c.h.b16 %v195
    %v1059 = vunpack.c.l.b16 %v196
    %v1060 = vunpack.c.l.b16 %v197
    %v1061 = vunpack.c.h.b16 %v197
    %v1062 = vunpack.c.l.b16 %v198
    %v1063 = vunpack.c.h.b16 %v198
    %v1064 = vunpack.c.l.b16 %v199
    %v1065 = vunpack.c.h.b16 %v199
    %v1066 = vunpack.c.l.b16 %v200
    %v1067 = vunpack.c.l.b16 %v201
    %v1068 = vunpack.c.h.b16 %v201
    %v1069 = vunpack.c.l.b16 %v202
    %v1070 = vunpack.c.h.b16 %v202
    %v1071 = vunpack.c.l.b16 %v203
    %v1072 = vunpack.c.h.b16 %v203
    %v1073 = vunpack.c.l.b16 %v204
    %v1074 = vunpack.c.l.b16 %v205
    %v1075 = vunpack.c.h.b16 %v205
    %v1076 = vunpack.c.l.b16 %v206
    %v1077 = vunpack.c.h.b16 %v206
    %v1078 = vunpack.c.l.b16 %v207
    %v1079 = vunpack.c.h.b16 %v207
    %v1080 = vunpack.c.l.b16 %v208
    %v1081 = vunpack.c.l.b16 %v209
    %v1082 = vunpack.c.h.b16 %v209
    %v1083 = vunpack.c.l.b16 %v210
    %v1084 = vunpack.c.h.b16 %v210
    %v1085 = vunpack.c.l.b16 %v211
    %v1086 = vunpack.c.h.b16 %v211
    %v1087 = vunpack.c.l.b16 %v212
    %v1088 = vunpack.c.l.b16 %v213
    %v1089 = vunpack.c.h.b16 %v213
    %v1090 = vunpack.c.l.b16 %v214
    %v1091 = vunpack.c.h.b16 %v214
    %v1092 = vunpack.c.l.b16 %v215
    %v1093 = vunpack.c.h.b16 %v215
    %v1094 = vunpack.c.l.b16 %v216
    %v1095 = vunpack.c.l.b16 %v217
    %v1096 = vunpack.c.h.b16 %v217
    %v1097 = vunpack.c.l.b16 %v218
    %v1098 = vunpack.c.h.b16 %v218
    %v1099 = vunpack.c.l.b16 %v219
    %v1100 = vunpack.c.h.b16 %v219
    %v1101 = vunpack.c.l.b16 %v220
    %v1102 = vunpack.c.l.b16 %v221
    %v1103 = vunpack.c.h.b16 %v221
    %v1104 = vunpack.c.l.b16 %v222
    %v1105 = vunpack.c.h.b16 %v222
    %v1106 = vunpack.c.l.b16 %v223
    %v1107 = vunpack.c.h.b16 %v223
    %v1108 = vunpack.c.l.b16 %v224
    %v1109 = vunpack.c.l.b16 %v225
    %v1110 = vunpack.c.h.b16 %v225
    %v1111 = vunpack.c.l.b16 %v226
    %v1112 = vunpack.c.h.b16 %v226
    %v1113 = vunpack.c.l.b16 %v227
    %v1114 = vunpack.c.h.b16 %v227
    %v1115 = vunpack.c.l.b16 %v228
    %v1116 = vunpack.c.l.b16 %v229
    %v1117 = vunpack.c.h.b16 %v229
    %v1118 = vunpack.c.l.b16 %v230
    %v1119 = vunpack.c.h.b16 %v230
    %v1120 = vunpack.c.l.b16 %v231
    %v1121 = vunpack.c.h.b16 %v231
    %v1122 = vunpack.c.l.b16 %v232
    %v1123 = vunpack.c.l.b16 %v233
    %v1124 = vunpack.c.h.b16 %v233
    %v1125 = vunpack.c.l.b16 %v234
    %v1126 = vunpack.c.h.b16 %v234
    %v1127 = vunpack.c.l.b16 %v235
    %v1128 = vunpack.c.h.b16 %v235
    %v1129 = vunpack.c.l.b16 %v236
    %v1130 = vunpack.c.l.b16 %v237
    %v1131 = vunpack.c.h.b16 %v237
    %v1132 = vunpack.c.l.b16 %v238
    %v1133 = vunpack.c.h.b16 %v238
    %v1134 = vunpack.c.l.b16 %v239
    %v1135 = vunpack.c.h.b16 %v239
    %v1136 = vunpack.c.l.b16 %v240
    %v1137 = vunpack.c.l.b16 %v241
    %v1138 = vunpack.c.h.b16 %v241
    %v1139 = vunpack.c.l.b16 %v242
    %v1140 = vunpack.c.h.b16 %v242
    %v1141 = vunpack.c.l.b16 %v243
    %v1142 = vunpack.c.h.b16 %v243
    %v1143 = vunpack.c.l.b16 %v244
    %v1144 = vunpack.c.l.b16 %v245
    %v1145 = vunpack.c.h.b16 %v245
    %v1146 = vunpack.c.l.b16 %v246
    %v1147 = vunpack.c.h.b16 %v246
    %v1148 = vunpack.c.l.b16 %v247
    %v1149 = vunpack.c.h.b16 %v247
    %v1150 = vunpack.c.l.b16 %v248
    %v1151 = vunpack.c.l.b16 %v249
    %v1152 = vunpack.c.h.b16 %v249
    %v1153 = vunpack.c.l.b16 %v250
    %v1154 = vunpack.c.h.b16 %v250
    %v1155 = vunpack.c.l.b16 %v251
    %v1156 = vunpack.c.h.b16 %v251
    %v1157 = vunpack.c.l.b16 %v252
    %v1158 = vunpack.c.l.b16 %v253
    %v1159 = vunpack.c.h.b16 %v253
    %v1160 = vunpack.c.l.b16 %v254
    %v1161 = vunpack.c.h.b16 %v254
    %v1162 = vunpack.c.l.b16 %v255
    %v1163 = vunpack.c.h.b16 %v255
    %v1164 = vunpack.c.l.b16 %v256
    %v1165 = vunpack.c.l.b16 %v257
    %v1166 = vunpack.c.h.b16 %v257
    %v1167 = vunpack.c.l.b16 %v258
    %v1168 = vunpack.c.h.b16 %v258
    %v1169 = vunpack.c.l.b16 %v259
    %v1170 = vunpack.c.h.b16 %v259
    %v1171 = vunpack.c.l.b16 %v260
    %v1172 = vunpack.c.l.b16 %v261
    %v1173 = vunpack.c.h.b16 %v261
    %v1174 = vunpack.c.l.b16 %v262
    %v1175 = vunpack.c.h.b16 %v262
    %v1176 = vunpack.c.l.b16 %v263
    %v1177 = vunpack.c.h.b16 %v263
    %v1178 = vunpack.c.l.b16 %v264
    %v1179 = vunpack.c.l.b16 %v265
    %v1180 = vunpack.c.h.b16 %v265
    %v1181 = vunpack.c.l.b16 %v266
    %v1182 = vunpack.c.h.b16 %v266
    %v1183 = vunpack.c.l.b16 %v267
    %v1184 = vunpack.c.h.b16 %v267
    %v1185 = vunpack.c.l.b16 %v268
    %v1186 = vunpack.c.l.b16 %v269
    %v1187 = vunpack.c.h.b16 %v269
    %v1188 = vunpack.c.l.b16 %v270
    %v1189 = vunpack.c.h.b16 %v270
    %v1190 = vunpack.c.l.b16 %v271
    %v1191 = vunpack.c.h.b16 %v271
    %v1192 = vunpack.c.l.b16 %v272
    %v1193 = vunpack.c.l.b16 %v273
    %v1194 = vunpack.c.h.b16 %v273
    %v1195 = vunpack.c.l.b16 %v274
    %v1196 = vunpack.c.h.b16 %v274
    %v1197 = vunpack.c.l.b16 %v275
    %v1198 = vunpack.c.h.b16 %v275
    %v1199 = vunpack.c.l.b16 %v276
    %v1200 = vunpack.c.l.b16 %v277
    %v1201 = vunpack.c.h.b16 %v277
    %v1202 = vunpack.c.l.b16 %v278
    %v1203 = vunpack.c.h.b16 %v278
    %v1204 = vunpack.c.l.b16 %v279
    %v1205 = vunpack.c.h.b16 %v279
    %v1206 = vunpack.c.l.b16 %v280
    %v1207 = vunpack.c.l.b16 %v281
    %v1208 = vunpack.c.h.b16 %v281
    %v1209 = vunpack.c.l.b16 %v282
    %v1210 = vunpack.c.h.b16 %v282
    %v1211 = vunpack.c.l.b16 %v283
    %v1212 = vunpack.c.h.b16 %v283
    %v1213 = vunpack.c.l.b16 %v284
    %v1214 = vunpack.c.l.b16 %v285
    %v1215 = vunpack.c.h.b16 %v285
    %v1216 = vunpack.c.l.b16 %v286
    %v1217 = vunpack.c.h.b16 %v286
    %v1218 = vunpack.c.l.b16 %v287
    %v1219 = vunpack.c.h.b16 %v287
    %v1220 = vunpack.c.l.b16 %v288
    %v1221 = vunpack.c.l.b16 %v289
    %v1222 = vunpack.c.h.b16 %v289
    %v1223 = vunpack.c.l.b16 %v290
    %v1224 = vunpack.c.h.b16 %v290
    %v1225 = vunpack.c.l.b16 %v291
    %v1226 = vunpack.c.h.b16 %v291
    %v1227 = vunpack.c.l.b16 %v292
    %v1228 = vunpack.c.l.b16 %v293
    %v1229 = vunpack.c.h.b16 %v293
    %v1230 = vunpack.c.l.b16 %v294
    %v1231 = vunpack.c.h.b16 %v294
    %v1232 = vunpack.c.l.b16 %v295
    %v1233 = vunpack.c.h.b16 %v295
    %v1234 = vunpack.c.l.b16 %v296
    %v1235 = vunpack.c.l.b16 %v297
    %v1236 = vunpack.c.h.b16 %v297
    %v1237 = vunpack.c.l.b16 %v298
    %v1238 = vunpack.c.h.b16 %v298
    %v1239 = vunpack.c.l.b16 %v299
    %v1240 = vunpack.c.h.b16 %v299
    %v1241 = vunpack.c.l.b16 %v300
    %v1242 = vunpack.c.l.b16 %v301
    %v1243 = vunpack.c.h.b16 %v301
    %v1244 = vunpack.c.l.b16 %v302
    %v1245 = vunpack.c.h.b16 %v302
    %v1246 = vunpack.c.l.b16 %v303
    %v1247 = vunpack.c.h.b16 %v303
    %v1248 = vunpack.c.l.b16 %v304
    %v1249 = vunpack.c.l.b16 %v305
    %v1250 = vunpack.c.h.b16 %v305
    %v1251 = vunpack.c.l.b16 %v306
    %v1252 = vunpack.c.h.b16 %v306
    %v1253 = vunpack.c.l.b16 %v307
    %v1254 = vunpack.c.h.b16 %v307
    %v1255 = vunpack.c.l.b16 %v308
    %v1256 = vunpack.c.l.b16 %v309
    %v1257 = vunpack.c.h.b16 %v309
    %v1258 = vunpack.c.l.b16 %v310
    %v1259 = vunpack.c.h.b16 %v310
    %v1260 = vunpack.c.l.b16 %v311
    %v1261 = vunpack.c.h.b16 %v311
    %v1262 = vunpack.c.l.b16 %v312
    %v1263 = vunpack.c.l.b16 %v313
    %v1264 = vunpack.c.h.b16 %v313
    %v1265 = vunpack.c.l.b16 %v314
    %v1266 = vunpack.c.h.b16 %v314
    %v1267 = vunpack.c.l.b16 %v315
    %v1268 = vunpack.c.h.b16 %v315
    %v1269 = vunpack.c.l.b16 %v316
    %v1270 = vunpack.c.l.b16 %v317
    %v1271 = vunpack.c.h.b16 %v317
    %v1272 = vunpack.c.l.b16 %v318
    %v1273 = vunpack.c.h.b16 %v318
    %v1274 = vunpack.c.l.b16 %v319
    %v1275 = vunpack.c.h.b16 %v319
    %v1276 = vunpack.c.l.b16 %v320
    %v1277 = vunpack.c.l.b16 %v321
    %v1278 = vunpack.c.h.b16 %v321
    %v1279 = vunpack.c.l.b16 %v322
    %v1280 = vunpack.c.h.b16 %v322
    %v1281 = vunpack.c.l.b16 %v323
    %v1282 = vunpack.c.h.b16 %v323
    %v1283 = vunpack.c.l.b16 %v324
    %v1284 = vunpack.c.l.b16 %v325
    %v1285 = vunpack.c.h.b16 %v325
    %v1286 = vunpack.c.l.b16 %v326
    %v1287 = vunpack.c.h.b16 %v326
    %v1288 = vunpack.c.l.b16 %v327
    %v1289 = vunpack.c.h.b16 %v327
    %v1290 = vunpack.c.l.b16 %v328
    %v1291 = vunpack.c.l.b16 %v329
    %v1292 = vunpack.c.h.b16 %v329
    %v1293 = vunpack.c.l.b16 %v330
    %v1294 = vunpack.c.h.b16 %v330
    %v1295 = vunpack.c.l.b16 %v331
    %v1296 = vunpack.c.h.b16 %v331
    %v1297 = vunpack.c.l.b16 %v332
    %v1298 = vunpack.c.l.b16 %v333
    %v1299 = vunpack.c.h.b16 %v333
    %v1300 = vunpack.c.l.b16 %v334
    %v1301 = vunpack.c.h.b16 %v334
    %v1302 = vunpack.c.l.b16 %v335
    %v1303 = vunpack.c.h.b16 %v335
    %v1304 = vunpack.c.l.b16 %v336
    %v1305 = vunpack.c.l.b16 %v337
    %v1306 = vunpack.c.h.b16 %v337
    %v1307 = vunpack.c.l.b16 %v338
    %v1308 = vunpack.c.h.b16 %v338
    %v1309 = vunpack.c.l.b16 %v339
    %v1310 = vunpack.c.h.b16 %v339
    %v1311 = vunpack.c.l.b16 %v340
    %v1312 = vunpack.c.l.b16 %v341
    %v1313 = vunpack.c.h.b16 %v341
    %v1314 = vunpack.c.l.b16 %v342
    %v1315 = vunpack.c.h.b16 %v342
    %v1316 = vunpack.c.l.b16 %v343
    %v1317 = vunpack.c.h.b16 %v343
    %v1318 = vunpack.c.l.b16 %v344
    %v1319 = vunpack.c.l.b16 %v345
    %v1320 = vunpack.c.h.b16 %v345
    %v1321 = vunpack.c.l.b16 %v346
    %v1322 = vunpack.c.h.b16 %v346
    %v1323 = vunpack.c.l.b16 %v347
    %v1324 = vunpack.c.h.b16 %v347
    %v1325 = vunpack.c.l.b16 %v348
    %v1326 = vunpack.c.l.b16 %v349
    %v1327 = vunpack.c.h.b16 %v349
    %v1328 = vunpack.c.l.b16 %v350
    %v1329 = vunpack.c.h.b16 %v350
    %v1330 = vunpack.c.l.b16 %v351
    %v1331 = vunpack.c.h.b16 %v351
    %v1332 = vunpack.c.l.b16 %v352
    %v1333 = vunpack.c.l.b16 %v353
    %v1334 = vunpack.c.h.b16 %v353
    %v1335 = vunpack.c.l.b16 %v354
    %v1336 = vunpack.c.h.b16 %v354
    %v1337 = vunpack.c.l.b16 %v355
    %v1338 = vunpack.c.h.b16 %v355
    %v1339 = vunpack.c.l.b16 %v356
    %v1340 = vunpack.c.l.b16 %v357
    %v1341 = vunpack.c.h.b16 %v357
    %v1342 = vunpack.c.l.b16 %v358
    %v1343 = vunpack.c.h.b16 %v358
    %v1344 = vunpack.c.l.b16 %v359
    %v1345 = vunpack.c.h.b16 %v359
    %v1346 = vunpack.c.l.b16 %v360
    %v1347 = vunpack.c.l.b16 %v361
    %v1348 = vunpack.c.h.b16 %v361
    %v1349 = vunpack.c.l.b16 %v362
    %v1350 = vunpack.c.h.b16 %v362
    %v1351 = vunpack.c.l.b16 %v363
    %v1352 = vunpack.c.h.b16 %v363
    %v1353 = vunpack.c.l.b16 %v364
    %v1354 = vunpack.c.l.b16 %v365
    %v1355 = vunpack.c.h.b16 %v365
    %v1356 = vunpack.c.l.b16 %v366
    %v1357 = vunpack.c.h.b16 %v366
    %v1358 = vunpack.c.l.b16 %v367
    %v1359 = vunpack.c.h.b16 %v367
    %v1360 = vunpack.c.l.b16 %v368
    %v1361 = vunpack.c.l.b16 %v369
    %v1362 = vunpack.c.h.b16 %v369
    %v1363 = vunpack.c.l.b16 %v370
    %v1364 = vunpack.c.h.b16 %v370
    %v1365 = vunpack.c.l.b16 %v371
    %v1366 = vunpack.c.h.b16 %v371
    %v1367 = vunpack.c.l.b16 %v372
    %v1368 = vunpack.c.l.b16 %v373
    %v1369 = vunpack.c.h.b16 %v373
    %v1370 = vunpack.c.l.b16 %v374
    %v1371 = vunpack.c.h.b16 %v374
    %v1372 = vunpack.c.l.b16 %v375
    %v1373 = vunpack.c.h.b16 %v375
    %v1374 = vunpack.c.l.b16 %v376
    %v1375 = vunpack.c.l.b16 %v377
    %v1376 = vunpack.c.h.b16 %v377
    %v1377 = vunpack.c.l.b16 %v378
    %v1378 = vunpack.c.h.b16 %v378
    %v1379 = vunpack.c.l.b16 %v379
    %v1380 = vunpack.c.h.b16 %v379
    %v1381 = vunpack.c.l.b16 %v380
    %v1382 = vunpack.c.l.b16 %v381
    %v1383 = vunpack.c.h.b16 %v381
    %v1384 = vunpack.c.l.b16 %v382
    %v1385 = vunpack.c.h.b16 %v382
    %v1386 = vunpack.c.l.b16 %v383
    %v1387 = vunpack.c.h.b16 %v383
    %v1388 = vunpack.c.l.b16 %v384
    %v1389 = vunpack.c.l.b16 %v385
    %v1390 = vunpack.c.h.b16 %v385
    %v1391 = vunpack.c.l.b16 %v386
    %v1392 = vunpack.c.h.b16 %v386
    %v1393 = vunpack.c.l.b16 %v387
    %v1394 = vunpack.c.h.b16 %v387
    %v1395 = vunpack.c.l.b16 %v388
    %v1396 = vunpack.c.l.b16 %v389
    %v1397 = vunpack.c.h.b16 %v389
    %v1398 = vunpack.c.l.b16 %v390
    %v1399 = vunpack.c.h.b16 %v390
    %v1400 = vunpack.c.l.b16 %v391
    %v1401 = vunpack.c.h.b16 %v391
    %v1402 = vunpack.c.l.b16 %v392
    %v1403 = vunpack.c.l.b16 %v393
    %v1404 = vunpack.c.h.b16 %v393
    %v1405 = vunpack.c.l.b16 %v394
    %v1406 = vunpack.c.h.b16 %v394
    %v1407 = vunpack.c.l.b16 %v395
    %v1408 = vunpack.c.h.b16 %v395
    %v1409 = vunpack.c.l.b16 %v396
    %v1410 = vunpack.c.l.b16 %v397
    %v1411 = vunpack.c.h.b16 %v397
    %v1412 = vunpack.c.l.b16 %v398
    %v1413 = vunpack.c.h.b16 %v398
    %v1414 = vunpack.c.l.b16 %v399
    %v1415 = vunpack.c.h.b16 %v399
    %v1416 = vunpack.c.l.b16 %v400
    %v1417 = vunpack.c.l.b16 %v401
    %v1418 = vunpack.c.h.b16 %v401
    %v1419 = vunpack.c.l.b16 %v402
    %v1420 = vunpack.c.h.b16 %v402
    %v1421 = vunpack.c.l.b16 %v403
    %v1422 = vunpack.c.h.b16 %v403
    %v1423 = vunpack.c.l.b16 %v404
    %v1424 = vunpack.c.l.b16 %v405
    %v1425 = vunpack.c.h.b16 %v405
    %v1426 = vunpack.c.l.b16 %v406
    %v1427 = vunpack.c.h.b16 %v406
    %v1428 = vunpack.c.l.b16 %v407
    %v1429 = vunpack.c.h.b16 %v407
    %v1430 = vunpack.c.l.b16 %v408
    %v1431 = vunpack.c.l.b16 %v409
    %v1432 = vunpack.c.h.b16 %v409
    %v1433 = vunpack.c.l.b16 %v410
    %v1434 = vunpack.c.h.b16 %v410
    %v1435 = vunpack.c.l.b16 %v411
    %v1436 = vunpack.c.h.b16 %v411
    %v1437 = vunpack.c.l.b16 %v412
    %v1438 = vunpack.c.l.b16 %v413
    %v1439 = vunpack.c.h.b16 %v413
    %v1440 = vunpack.c.l.b16 %v414
    %v1441 = vunpack.c.h.b16 %v414
    %v1442 = vunpack.c.l.b16 %v415
    %v1443 = vunpack.c.h.b16 %v415
    %v1444 = vunpack.c.l.b16 %v416
    %v1445 = vunpack.c.l.b16 %v417
    %v1446 = vunpack.c.h.b16 %v417
    %v1447 = vunpack.c.l.b16 %v418
    %v1448 = vunpack.c.h.b16 %v418
    %v1449 = vunpack.c.l.b16 %v419
    %v1450 = vunpack.c.h.b16 %v419
    %v1451 = vunpack.c.l.b16 %v420
    %v1452 = vunpack.c.l.b16 %v421
    %v1453 = vunpack.c.h.b16 %v421
    %v1454 = vunpack.c.l.b16 %v422
    %v1455 = vunpack.c.h.b16 %v422
    %v1456 = vunpack.c.l.b16 %v423
    %v1457 = vunpack.c.h.b16 %v423
    %v1458 = vunpack.c.l.b16 %v424
    %v1459 = vunpack.c.l.b16 %v425
    %v1460 = vunpack.c.h.b16 %v425
    %v1461 = vunpack.c.l.b16 %v426
    %v1462 = vunpack.c.h.b16 %v426
    %v1463 = vunpack.c.l.b16 %v427
    %v1464 = vunpack.c.h.b16 %v427
    %v1465 = vunpack.c.l.b16 %v428
    %v1466 = vunpack.c.l.b16 %v429
    %v1467 = vunpack.c.h.b16 %v429
    %v1468 = vunpack.c.l.b16 %v430
    %v1469 = vunpack.c.h.b16 %v430
    %v1470 = vunpack.c.l.b16 %v431
    %v1471 = vunpack.c.h.b16 %v431
    %v1472 = vunpack.c.l.b16 %v432
    %v1473 = vunpack.c.l.b16 %v433
    %v1474 = vunpack.c.h.b16 %v433
    %v1475 = vunpack.c.l.b16 %v434
    %v1476 = vunpack.c.h.b16 %v434
    %v1477 = vunpack.c.l.b16 %v435
    %v1478 = vunpack.c.h.b16 %v435
    %v1479 = vunpack.c.l.b16 %v436
    %v1480 = vunpack.c.l.b16 %v437
    %v1481 = vunpack.c.h.b16 %v437
    %v1482 = vunpack.c.l.b16 %v438
    %v1483 = vunpack.c.h.b16 %v438
    %v1484 = vunpack.c.l.b16 %v439
    %v1485 = vunpack.c.h.b16 %v439
    %v1486 = vunpack.c.l.b16 %v440
    %v1487 = vunpack.c.l.b16 %v441
    %v1488 = vunpack.c.h.b16 %v441
    %v1489 = vunpack.c.l.b16 %v442
    %v1490 = vunpack.c.h.b16 %v442
    %v1491 = vunpack.c.l.b16 %v443
    %v1492 = vunpack.c.h.b16 %v443
    %v1493 = vunpack.c.l.b16 %v444
    %v1494 = vunpack.c.l.b16 %v445
    %v1495 = vunpack.c.h.b16 %v445
    %v1496 = vunpack.c.l.b16 %v446
    %v1497 = vunpack.c.h.b16 %v446
    %v1498 = vunpack.c.l.b16 %v447
    %v1499 = vunpack.c.h.b16 %v447
    %v1500 = vunpack.c.l.b16 %v448
    %v1501 = vunpack.c.l.b16 %v449
    %v1502 = vunpack.c.h.b16 %v449
    %v1503 = vunpack.c.l.b16 %v450
    %v1504 = vunpack.c.h.b16 %v450
    %v1505 = vunpack.c.l.b16 %v451
    %v1506 = vunpack.c.h.b16 %v451
    %v1507 = vunpack.c.l.b16 %v452
    %v1508 = vunpack.c.l.b16 %v453
    %v1509 = vunpack.c.h.b16 %v453
    %v1510 = vunpack.c.l.b16 %v454
    %v1511 = vunpack.c.h.b16 %v454
    %v1512 = vunpack.c.l.b16 %v455
    %v1513 = vunpack.c.h.b16 %v455
    %v1514 = vunpack.c.l.b16 %v456
    %v1515 = vunpack.c.l.b16 %v457
    %v1516 = vunpack.c.h.b16 %v457
    %v1517 = vunpack.c.l.b16 %v458
    %v1518 = vunpack.c.h.b16 %v458
    %v1519 = vunpack.c.l.b16 %v459
    %v1520 = vunpack.c.h.b16 %v459
    %v1521 = vunpack.c.l.b16 %v460
    %v1522 = vunpack.c.l.b16 %v461
    %v1523 = vunpack.c.h.b16 %v461
    %v1524 = vunpack.c.l.b16 %v462
    %v1525 = vunpack.c.h.b16 %v462
    %v1526 = vunpack.c.l.b16 %v463
    %v1527 = vunpack.c.h.b16 %v463
    %v1528 = vunpack.c.l.b16 %v464
    %v1529 = vunpack.c.l.b16 %v465
    %v1530 = vunpack.c.h.b16 %v465
    %v1531 = vunpack.c.l.b16 %v466
    %v1532 = vunpack.c.h.b16 %v466
    %v1533 = vunpack.c.l.b16 %v467
    %v1534 = vunpack.c.h.b16 %v467
    %v1535 = vunpack.c.l.b16 %v468
    %v1536 = vunpack.c.l.b16 %v469
    %v1537 = vunpack.c.h.b16 %v469
    %v1538 = vunpack.c.l.b16 %v470
    %v1539 = vunpack.c.h.b16 %v470
    %v1540 = vunpack.c.l.b16 %v471
    %v1541 = vunpack.c.h.b16 %v471
    %v1542 = vunpack.c.l.b16 %v472
    %v1543 = vunpack.c.l.b16 %v473
    %v1544 = vunpack.c.h.b16 %v473
    %v1545 = vunpack.c.l.b16 %v474
    %v1546 = vunpack.c.h.b16 %v474
    %v1547 = vunpack.c.l.b16 %v475
    %v1548 = vunpack.c.h.b16 %v475
    %v1549 = vunpack.c.l.b16 %v476
    %v1550 = vunpack.c.l.b16 %v477
    %v1551 = vunpack.c.h.b16 %v477
    %v1552 = vunpack.c.l.b16 %v478
    %v1553 = vunpack.c.h.b16 %v478
    %v1554 = vunpack.c.l.b16 %v479
    %v1555 = vunpack.c.h.b16 %v479
    %v1556 = vunpack.c.l.b16 %v480
    %v1557 = vunpack.c.l.b16 %v481
    %v1558 = vunpack.c.h.b16 %v481
    %v1559 = vunpack.c.l.b16 %v482
    %v1560 = vunpack.c.h.b16 %v482
    %v1561 = vunpack.c.l.b16 %v483
    %v1562 = vunpack.c.h.b16 %v483
    %v1563 = vunpack.c.l.b16 %v484
    %v1564 = vunpack.c.l.b16 %v485
    %v1565 = vunpack.c.h.b16 %v485
    %v1566 = vunpack.c.l.b16 %v486
    %v1567 = vunpack.c.h.b16 %v486
    %v1568 = vunpack.c.l.b16 %v487
    %v1569 = vunpack.c.h.b16 %v487
    %v1570 = vunpack.c.l.b16 %v488
    %v1571 = vunpack.c.l.b16 %v489
    %v1572 = vunpack.c.h.b16 %v489
    %v1573 = vunpack.c.l.b16 %v490
    %v1574 = vunpack.c.h.b16 %v490
    %v1575 = vunpack.c.l.b16 %v491
    %v1576 = vunpack.c.h.b16 %v491
    %v1577 = vunpack.c.l.b16 %v492
    %v1578 = vunpack.c.l.b16 %v493
    %v1579 = vunpack.c.h.b16 %v493
    %v1580 = vunpack.c.l.b16 %v494
    %v1581 = vunpack.c.h.b16 %v494
    %v1582 = vunpack.c.l.b16 %v495
    %v1583 = vunpack.c.h.b16 %v495
    %v1584 = vunpack.c.l.b16 %v496
    %v1585 = vunpack.c.l.b16 %v497
    %v1586 = vunpack.c.h.b16 %v497
    %v1587 = vunpack.c.l.b16 %v498
    %v1588 = vunpack.c.h.b16 %v498
    %v1589 = vunpack.c.l.b16 %v499
    %v1590 = vunpack.c.h.b16 %v499
    %v1591 = vunpack.c.l.b16 %v500
    %v1592 = vunpack.c.l.b16 %v501
    %v1593 = vunpack.c.h.b16 %v501
    %v1594 = vunpack.c.l.b16 %v502
    %v1595 = vunpack.c.h.b16 %v502
    %v1596 = vunpack.c.l.b16 %v503
    %v1597 = vunpack.c.h.b16 %v503
    %v1598 = vunpack.c.l.b16 %v504
    %v1599 = vpack.c.b16 %v920, %v913
    %v1600 = vpack.c.b16 %v921, %v914
    %v1601 = vpack.c.b16 %v922, %v915
    %v1602 = vpack.c.b16 %v923, %v916
    %v1603 = vpack.c.b16 %v924, %v917
    %v1604 = vpack.c.b16 %v925, %v918
    %v1605 = vpack.c.b16 %v926, %v919
    %v1606 = vpack.c.b16 %v934, %v927
    %v1607 = vpack.c.b16 %v935, %v928
    %v1608 = vpack.c.b16 %v936, %v929
    %v1609 = vpack.c.b16 %v937, %v930
    %v1610 = vpack.c.b16 %v938, %v931
    %v1611 = vpack.c.b16 %v939, %v932
    %v1612 = vpack.c.b16 %v940, %v933
    %v1613 = vpack.c.b16 %v948, %v941
    %v1614 = vpack.c.b16 %v949, %v942
    %v1615 = vpack.c.b16 %v950, %v943
    %v1616 = vpack.c.b16 %v951, %v944
    %v1617 = vpack.c.b16 %v952, %v945
    %v1618 = vpack.c.b16 %v953, %v946
    %v1619 = vpack.c.b16 %v954, %v947
    %v1620 = vpack.c.b16 %v962, %v955
    %v1621 = vpack.c.b16 %v963, %v956
    %v1622 = vpack.c.b16 %v964, %v957
    %v1623 = vpack.c.b16 %v965, %v958
    %v1624 = vpack.c.b16 %v966, %v959
    %v1625 = vpack.c.b16 %v967, %v960
    %v1626 = vpack.c.b16 %v968, %v961
    %v1627 = vpack.c.b16 %v976, %v969
    %v1628 = vpack.c.b16 %v977, %v970
    %v1629 = vpack.c.b16 %v978, %v971
    %v1630 = vpack.c.b16 %v979, %v972
    %v1631 = vpack.c.b16 %v980, %v973
    %v1632 = vpack.c.b16 %v981, %v974
    %v1633 = vpack.c.b16 %v982, %v975
    %v1634 = vpack.c.b16 %v990, %v983
    %v1635 = vpack.c.b16 %v991, %v984
    %v1636 = vpack.c.b16 %v992, %v985
    %v1637 = vpack.c.b16 %v993, %v986
    %v1638 = vpack.c.b16 %v994, %v987
    %v1639 = vpack.c.b16 %v995, %v988
    %v1640 = vpack.c.b16 %v996, %v989
    %v1641 = vpack.c.b16 %v1004, %v997
    %v1642 = vpack.c.b16 %v1005, %v998
    %v1643 = vpack.c.b16 %v1006, %v999
    %v1644 = vpack.c.b16 %v1007, %v1000
    %v1645 = vpack.c.b16 %v1008, %v1001
    %v1646 = vpack.c.b16 %v1009, %v1002
    %v1647 = vpack.c.b16 %v1010, %v1003
    %v1648 = vpack.c.b16 %v1018, %v1011
    %v1649 = vpack.c.b16 %v1019, %v1012
    %v1650 = vpack.c.b16 %v1020, %v1013
    %v1651 = vpack.c.b16 %v1021, %v1014
    %v1652 = vpack.c.b16 %v1022, %v1015
    %v1653 = vpack.c.b16 %v1023, %v1016
    %v1654 = vpack.c.b16 %v1024, %v1017
    %v1655 = vpack.c.b16 %v1032, %v1025
    %v1656 = vpack.c.b16 %v1033, %v1026
    %v1657 = vpack.c.b16 %v1034, %v1027
    %v1658 = vpack.c.b16 %v1035, %v1028
    %v1659 = vpack.c.b16 %v1036, %v1029
    %v1660 = vpack.c.b16 %v1037, %v1030
    %v1661 = vpack.c.b16 %v1038, %v1031
    %v1662 = vpack.c.b16 %v1046, %v1039
    %v1663 = vpack.c.b16 %v1047, %v1040
    %v1664 = vpack.c.b16 %v1048, %v1041
    %v1665 = vpack.c.b16 %v1049, %v1042
    %v1666 = vpack.c.b16 %v1050, %v1043
    %v1667 = vpack.c.b16 %v1051, %v1044
    %v1668 = vpack.c.b16 %v1052, %v1045
    %v1669 = vpack.c.b16 %v1060, %v1053
    %v1670 = vpack.c.b16 %v1061, %v1054
    %v1671 = vpack.c.b16 %v1062, %v1055
    %v1672 = vpack.c.b16 %v1063, %v1056
    %v1673 = vpack.c.b16 %v1064, %v1057
    %v1674 = vpack.c.b16 %v1065, %v1058
    %v1675 = vpack.c.b16 %v1066, %v1059
    %v1676 = vpack.c.b16 %v1074, %v1067
    %v1677 = vpack.c.b16 %v1075, %v1068
    %v1678 = vpack.c.b16 %v1076, %v1069
    %v1679 = vpack.c.b16 %v1077, %v1070
    %v1680 = vpack.c.b16 %v1078, %v1071
    %v1681 = vpack.c.b16 %v1079, %v1072
    %v1682 = vpack.c.b16 %v1080, %v1073
    %v1683 = vpack.c.b16 %v1088, %v1081
    %v1684 = vpack.c.b16 %v1089, %v1082
    %v1685 = vpack.c.b16 %v1090, %v1083
    %v1686 = vpack.c.b16 %v1091, %v1084
    %v1687 = vpack.c.b16 %v1092, %v1085
    %v1688 = vpack.c.b16 %v1093, %v1086
    %v1689 = vpack.c.b16 %v1094, %v1087
    %v1690 = vpack.c.b16 %v1102, %v1095
    %v1691 = vpack.c.b16 %v1103, %v1096
    %v1692 = vpack.c.b16 %v1104, %v1097
    %v1693 = vpack.c.b16 %v1105, %v1098
    %v1694 = vpack.c.b16 %v1106, %v1099
    %v1695 = vpack.c.b16 %v1107, %v1100
    %v1696 = vpack.c.b16 %v1108, %v1101
    %v1697 = vpack.c.b16 %v1116, %v1109
    %v1698 = vpack.c.b16 %v1117, %v1110
    %v1699 = vpack.c.b16 %v1118, %v1111
    %v1700 = vpack.c.b16 %v1119, %v1112
    %v1701 = vpack.c.b16 %v1120, %v1113
    %v1702 = vpack.c.b16 %v1121, %v1114
    %v1703 = vpack.c.b16 %v1122, %v1115
    %v1704 = vpack.c.b16 %v1130, %v1123
    %v1705 = vpack.c.b16 %v1131, %v1124
    %v1706 = vpack.c.b16 %v1132, %v1125
    %v1707 = vpack.c.b16 %v1133, %v1126
    %v1708 = vpack.c.b16 %v1134, %v1127
    %v1709 = vpack.c.b16 %v1135, %v1128
    %v1710 = vpack.c.b16 %v1136, %v1129
    %v1711 = vpack.c.b16 %v1144, %v1137
    %v1712 = vpack.c.b16 %v1145, %v1138
    %v1713 = vpack.c.b16 %v1146, %v1139
    %v1714 = vpack.c.b16 %v1147, %v1140
    %v1715 = vpack.c.b16 %v1148, %v1141
    %v1716 = vpack.c.b16 %v1149, %v1142
    %v1717 = vpack.c.b16 %v1150, %v1143
    %v1718 = vpack.c.b16 %v1158, %v1151
    %v1719 = vpack.c.b16 %v1159, %v1152
    %v1720 = vpack.c.b16 %v1160, %v1153
    %v1721 = vpack.c.b16 %v1161, %v1154
    %v1722 = vpack.c.b16 %v1162, %v1155
    %v1723 = vpack.c.b16 %v1163, %v1156
    %v1724 = vpack.c.b16 %v1164, %v1157
    %v1725 = vpack.c.b16 %v1172, %v1165
    %v1726 = vpack.c.b16 %v1173, %v1166
    %v1727 = vpack.c.b16 %v1174, %v1167
    %v1728 = vpack.c.b16 %v1175, %v1168
    %v1729 = vpack.c.b16 %v1176, %v1169
    %v1730 = vpack.c.b16 %v1177, %v1170
    %v1731 = vpack.c.b16 %v1178, %v1171
    %v1732 = vpack.c.b16 %v1186, %v1179
    %v1733 = vpack.c.b16 %v1187, %v1180
    %v1734 = vpack.c.b16 %v1188, %v1181
    %v1735 = vpack.c.b16 %v1189, %v1182
    %v1736 = vpack.c.b16 %v1190, %v1183
    %v1737 = vpack.c.b16 %v1191, %v1184
    %v1738 = vpack.c.b16 %v1192, %v1185
    %v1739 = vpack.c.b16 %v1200, %v1193
    %v1740 = vpack.c.b16 %v1201, %v1194
    %v1741 = vpack.c.b16 %v1202, %v1195
    %v1742 = vpack.c.b16 %v1203, %v1196
    %v1743 = vpack.c.b16 %v1204, %v1197
    %v1744 = vpack.c.b16 %v1205, %v1198
    %v1745 = vpack.c.b16 %v1206, %v1199
    %v1746 = vpack.c.b16 %v1214, %v1207
    %v1747 = vpack.c.b16 %v1215, %v1208
    %v1748 = vpack.c.b16 %v1216, %v1209
    %v1749 = vpack.c.b16 %v1217, %v1210
    %v1750 = vpack.c.b16 %v1218, %v1211
    %v1751 = vpack.c.b16 %v1219, %v1212
    %v1752 = vpack.c.b16 %v1220, %v1213
    %v1753 = vpack.c.b16 %v1228, %v1221
    %v1754 = vpack.c.b16 %v1229, %v1222
    %v1755 = vpack.c.b16 %v1230, %v1223
    %v1756 = vpack.c.b16 %v1231, %v1224
    %v1757 = vpack.c.b16 %v1232, %v1225
    %v1758 = vpack.c.b16 %v1233, %v1226
    %v1759 = vpack.c.b16 %v1234, %v1227
    %v1760 = vpack.c.b16 %v1242, %v1235
    %v1761 = vpack.c.b16 %v1243, %v1236
    %v1762 = vpack.c.b16 %v1244, %v1237
    %v1763 = vpack.c.b16 %v1245, %v1238
    %v1764 = vpack.c.b16 %v1246, %v1239
    %v1765 = vpack.c.b16 %v1247, %v1240
    %v1766 = vpack.c.b16 %v1248, %v1241
    %v1767 = vpack.c.b16 %v1256, %v1249
    %v1768 = vpack.c.b16 %v1257, %v1250
    %v1769 = vpack.c.b16 %v1258, %v1251
    %v1770 = vpack.c.b16 %v1259, %v1252
    %v1771 = vpack.c.b16 %v1260, %v1253
    %v1772 = vpack.c.b16 %v1261, %v1254
    %v1773 = vpack.c.b16 %v1262, %v1255
    %v1774 = vpack.c.b16 %v1270, %v1263
    %v1775 = vpack.c.b16 %v1271, %v1264
    %v1776 = vpack.c.b16 %v1272, %v1265
    %v1777 = vpack.c.b16 %v1273, %v1266
    %v1778 = vpack.c.b16 %v1274, %v1267
    %v1779 = vpack.c.b16 %v1275, %v1268
    %v1780 = vpack.c.b16 %v1276, %v1269
    %v1781 = vpack.c.b16 %v1284, %v1277
    %v1782 = vpack.c.b16 %v1285, %v1278
    %v1783 = vpack.c.b16 %v1286, %v1279
    %v1784 = vpack.c.b16 %v1287, %v1280
    %v1785 = vpack.c.b16 %v1288, %v1281
    %v1786 = vpack.c.b16 %v1289, %v1282
    %v1787 = vpack.c.b16 %v1290, %v1283
    %v1788 = vpack.c.b16 %v1298, %v1291
    %v1789 = vpack.c.b16 %v1299, %v1292
    %v1790 = vpack.c.b16 %v1300, %v1293
    %v1791 = vpack.c.b16 %v1301, %v1294
    %v1792 = vpack.c.b16 %v1302, %v1295
    %v1793 = vpack.c.b16 %v1303, %v1296
    %v1794 = vpack.c.b16 %v1304, %v1297
    %v1795 = vpack.c.b16 %v1312, %v1305
    %v1796 = vpack.c.b16 %v1313, %v1306
    %v1797 = vpack.c.b16 %v1314, %v1307
    %v1798 = vpack.c.b16 %v1315, %v1308
    %v1799 = vpack.c.b16 %v1316, %v1309
    %v1800 = vpack.c.b16 %v1317, %v1310
    %v1801 = vpack.c.b16 %v1318, %v1311
    %v1802 = vpack.c.b16 %v1326, %v1319
    %v1803 = vpack.c.b16 %v1327, %v1320
    %v1804 = vpack.c.b16 %v1328, %v1321
    %v1805 = vpack.c.b16 %v1329, %v1322
    %v1806 = vpack.c.b16 %v1330, %v1323
    %v1807 = vpack.c.b16 %v1331, %v1324
    %v1808 = vpack.c.b16 %v1332, %v1325
    %v1809 = vpack.c.b16 %v1340, %v1333
    %v1810 = vpack.c.b16 %v1341, %v1334
    %v1811 = vpack.c.b16 %v1342, %v1335
    %v1812 = vpack.c.b16 %v1343, %v1336
    %v1813 = vpack.c.b16 %v1344, %v1337
    %v1814 = vpack.c.b16 %v1345, %v1338
    %v1815 = vpack.c.b16 %v1346, %v1339
    %v1816 = vpack.c.b16 %v1354, %v1347
    %v1817 = vpack.c.b16 %v1355, %v1348
    %v1818 = vpack.c.b16 %v1356, %v1349
    %v1819 = vpack.c.b16 %v1357, %v1350
    %v1820 = vpack.c.b16 %v1358, %v1351
    %v1821 = vpack.c.b16 %v1359, %v1352
    %v1822 = vpack.c.b16 %v1360, %v1353
    %v1823 = vpack.c.b16 %v1368, %v1361
    %v1824 = vpack.c.b16 %v1369, %v1362
    %v1825 = vpack.c.b16 %v1370, %v1363
    %v1826 = vpack.c.b16 %v1371, %v1364
    %v1827 = vpack.c.b16 %v1372, %v1365
    %v1828 = vpack.c.b16 %v1373, %v1366
    %v1829 = vpack.c.b16 %v1374, %v1367
    %v1830 = vpack.c.b16 %v1382, %v1375
    %v1831 = vpack.c.b16 %v1383, %v1376
    %v1832 = vpack.c.b16 %v1384, %v1377
    %v1833 = vpack.c.b16 %v1385, %v1378
    %v1834 = vpack.c.b16 %v1386, %v1379
    %v1835 = vpack.c.b16 %v1387, %v1380
    %v1836 = vpack.c.b16 %v1388, %v1381
    %v1837 = vpack.c.b16 %v1396, %v1389
    %v1838 = vpack.c.b16 %v1397, %v1390
    %v1839 = vpack.c.b16 %v1398, %v1391
    %v1840 = vpack.c.b16 %v1399, %v1392
    %v1841 = vpack.c.b16 %v1400, %v1393
    %v1842 = vpack.c.b16 %v1401, %v1394
    %v1843 = vpack.c.b16 %v1402, %v1395
    %v1844 = vpack.c.b16 %v1410, %v1403
    %v1845 = vpack.c.b16 %v1411, %v1404
    %v1846 = vpack.c.b16 %v1412, %v1405
    %v1847 = vpack.c.b16 %v1413, %v1406
    %v1848 = vpack.c.b16 %v1414, %v1407
    %v1849 = vpack.c.b16 %v1415, %v1408
    %v1850 = vpack.c.b16 %v1416, %v1409
    %v1851 = vpack.c.b16 %v1424, %v1417
    %v1852 = vpack.c.b16 %v1425, %v1418
    %v1853 = vpack.c.b16 %v1426, %v1419
    %v1854 = vpack.c.b16 %v1427, %v1420
    %v1855 = vpack.c.b16 %v1428, %v1421
    %v1856 = vpack.c.b16 %v1429, %v1422
    %v1857 = vpack.c.b16 %v1430, %v1423
    %v1858 = vpack.c.b16 %v1438, %v1431
    %v1859 = vpack.c.b16 %v1439, %v1432
    %v1860 = vpack.c.b16 %v1440, %v1433
    %v1861 = vpack.c.b16 %v1441, %v1434
    %v1862 = vpack.c.b16 %v1442, %v1435
    %v1863 = vpack.c.b16 %v1443, %v1436
    %v1864 = vpack.c.b16 %v1444, %v1437
    %v1865 = vpack.c.b16 %v1452, %v1445
    %v1866 = vpack.c.b16 %v1453, %v1446
    %v1867 = vpack.c.b16 %v1454, %v1447
    %v1868 = vpack.c.b16 %v1455, %v1448
    %v1869 = vpack.c.b16 %v1456, %v1449
    %v1870 = vpack.c.b16 %v1457, %v1450
    %v1871 = vpack.c.b16 %v1458, %v1451
    %v1872 = vpack.c.b16 %v1466, %v1459
    %v1873 = vpack.c.b16 %v1467, %v1460
    %v1874 = vpack.c.b16 %v1468, %v1461
    %v1875 = vpack.c.b16 %v1469, %v1462
    %v1876 = vpack.c.b16 %v1470, %v1463
    %v1877 = vpack.c.b16 %v1471, %v1464
    %v1878 = vpack.c.b16 %v1472, %v1465
    %v1879 = vpack.c.b16 %v1480, %v1473
    %v1880 = vpack.c.b16 %v1481, %v1474
    %v1881 = vpack.c.b16 %v1482, %v1475
    %v1882 = vpack.c.b16 %v1483, %v1476
    %v1883 = vpack.c.b16 %v1484, %v1477
    %v1884 = vpack.c.b16 %v1485, %v1478
    %v1885 = vpack.c.b16 %v1486, %v1479
    %v1886 = vpack.c.b16 %v1494, %v1487
    %v1887 = vpack.c.b16 %v1495, %v1488
    %v1888 = vpack.c.b16 %v1496, %v1489
    %v1889 = vpack.c.b16 %v1497, %v1490
    %v1890 = vpack.c.b16 %v1498, %v1491
    %v1891 = vpack.c.b16 %v1499, %v1492
    %v1892 = vpack.c.b16 %v1500, %v1493
    %v1893 = vpack.c.b16 %v1508, %v1501
    %v1894 = vpack.c.b16 %v1509, %v1502
    %v1895 = vpack.c.b16 %v1510, %v1503
    %v1896 = vpack.c.b16 %v1511, %v1504
    %v1897 = vpack.c.b16 %v1512, %v1505
    %v1898 = vpack.c.b16 %v1513, %v1506
    %v1899 = vpack.c.b16 %v1514, %v1507
    %v1900 = vpack.c.b16 %v1522, %v1515
    %v1901 = vpack.c.b16 %v1523, %v1516
    %v1902 = vpack.c.b16 %v1524, %v1517
    %v1903 = vpack.c.b16 %v1525, %v1518
    %v1904 = vpack.c.b16 %v1526, %v1519
    %v1905 = vpack.c.b16 %v1527, %v1520
    %v1906 = vpack.c.b16 %v1528, %v1521
    %v1907 = vpack.c.b16 %v1536, %v1529
    %v1908 = vpack.c.b16 %v1537, %v1530
    %v1909 = vpack.c.b16 %v1538, %v1531
    %v1910 = vpack.c.b16 %v1539, %v1532
    %v1911 = vpack.c.b16 %v1540, %v1533
    %v1912 = vpack.c.b16 %v1541, %v1534
    %v1913 = vpack.c.b16 %v1542, %v1535
    %v1914 = vpack.c.b16 %v1550, %v1543
    %v1915 = vpack.c.b16 %v1551, %v1544
    %v1916 = vpack.c.b16 %v1552, %v1545
    %v1917 = vpack.c.b16 %v1553, %v1546
    %v1918 = vpack.c.b16 %v1554, %v1547
    %v1919 = vpack.c.b16 %v1555, %v1548
    %v1920 = vpack.c.b16 %v1556, %v1549
    %v1921 = vpack.c.b16 %v1564, %v1557
    %v1922 = vpack.c.b16 %v1565, %v1558
    %v1923 = vpack.c.b16 %v1566, %v1559
    %v1924 = vpack.c.b16 %v1567, %v1560
    %v1925 = vpack.c.b16 %v1568, %v1561
    %v1926 = vpack.c.b16 %v1569, %v1562
    %v1927 = vpack.c.b16 %v1570, %v1563
    %v1928 = vpack.c.b16 %v1578, %v1571
    %v1929 = vpack.c.b16 %v1579, %v1572
    %v1930 = vpack.c.b16 %v1580, %v1573
    %v1931 = vpack.c.b16 %v1581, %v1574
    %v1932 = vpack.c.b16 %v1582, %v1575
    %v1933 = vpack.c.b16 %v1583, %v1576
    %v1934 = vpack.c.b16 %v1584, %v1577
    %v1935 = vpack.c.b16 %v1592, %v1585
    %v1936 = vpack.c.b16 %v1593, %v1586
    %v1937 = vpack.c.b16 %v1594, %v1587
    %v1938 = vpack.c.b16 %v1595, %v1588
    %v1939 = vpack.c.b16 %v1596, %v1589
    %v1940 = vpack.c.b16 %v1597, %v1590
    %v1941 = vpack.c.b16 %v1598, %v1591
    %vm2236 = vcmask 130048
    %v2238 = vsel %vm2236, %v112, 0
    %v2241 = vsel %vm2236, %v1605, 0
    %v2244 = vsel %vm2236, %v1612, 0
    %v2247 = vsel %vm2236, %v1619, 0
    %v2250 = vsel %vm2236, %v1626, 0
    %v2253 = vsel %vm2236, %v1633, 0
    %v2256 = vsel %vm2236, %v1640, 0
    %v2259 = vsel %vm2236, %v1647, 0
    %v2262 = vsel %vm2236, %v1654, 0
    %v2265 = vsel %vm2236, %v1661, 0
    %v2268 = vsel %vm2236, %v1668, 0
    %v2271 = vsel %vm2236, %v1675, 0
    %v2274 = vsel %vm2236, %v1682, 0
    %v2277 = vsel %vm2236, %v1689, 0
    %v2280 = vsel %vm2236, %v1696, 0
    %v2283 = vsel %vm2236, %v1703, 0
    %v2286 = vsel %vm2236, %v1710, 0
    %v2289 = vsel %vm2236, %v1717, 0
    %v2292 = vsel %vm2236, %v1724, 0
    %v2295 = vsel %vm2236, %v1731, 0
    %v2298 = vsel %vm2236, %v1738, 0
    %v2301 = vsel %vm2236, %v1745, 0
    %v2304 = vsel %vm2236, %v1752, 0
    %v2307 = vsel %vm2236, %v1759, 0
    %v2310 = vsel %vm2236, %v1766, 0
    %v2313 = vsel %vm2236, %v1773, 0
    %v2316 = vsel %vm2236, %v1780, 0
    %v2319 = vsel %vm2236, %v1787, 0
    %v2322 = vsel %vm2236, %v1794, 0
    %v2325 = vsel %vm2236, %v1801, 0
    %v2328 = vsel %vm2236, %v1808, 0
    %v2331 = vsel %vm2236, %v1815, 0
    %v2334 = vsel %vm2236, %v1822, 0
    %v2337 = vsel %vm2236, %v1829, 0
    %v2340 = vsel %vm2236, %v1836, 0
    %v2343 = vsel %vm2236, %v1843, 0
    %v2346 = vsel %vm2236, %v1850, 0
    %v2349 = vsel %vm2236, %v1857, 0
    %v2352 = vsel %vm2236, %v1864, 0
    %v2355 = vsel %vm2236, %v1871, 0
    %v2358 = vsel %vm2236, %v1878, 0
    %v2361 = vsel %vm2236, %v1885, 0
    %v2364 = vsel %vm2236, %v1892, 0
    %v2367 = vsel %vm2236, %v1899, 0
    %v2370 = vsel %vm2236, %v1906, 0
    %v2373 = vsel %vm2236, %v1913, 0
    %v2376 = vsel %vm2236, %v1920, 0
    %v2379 = vsel %vm2236, %v1927, 0
    %v2382 = vsel %vm2236, %v1934, 0
    %v2385 = vsel %vm2236, %v1941, 0
    %2387 = vmatpush.bf16.xpose.msra.mxu0 %v1648
    %2388 = vmatpush.bf16.xpose.msra.mxu0 %v1641
    %2389 = vmatpush.bf16.xpose.msra.mxu0 %v1634
    %2390 = vmatpush.bf16.xpose.msra.mxu0 %v1627
    %2391 = vmatpush.bf16.xpose.msra.mxu0 %v1620
    %2392 = vmatpush.bf16.xpose.msra.mxu0 %v1613
    %2393 = vmatpush.bf16.xpose.msra.mxu0 %v1606
    %2394 = vmatpush.bf16.xpose.msra.mxu0 %v1599
    %2395 = vmatmul.bf16.gmra.mxu0 %v106
    %v2396 = vpop.f32.mrf.mxu0
    %v2397 = vadd.f32 %v507, %v2396
    %v2398 = vpop.f32.mrf.mxu0
    %2399 = vdwg.mxu0
    %2400 = vmatpush.bf16.xpose.msra.mxu0 %v1649
    %2401 = vmatpush.bf16.xpose.msra.mxu0 %v1642
    %2402 = vmatpush.bf16.xpose.msra.mxu0 %v1635
    %2403 = vmatpush.bf16.xpose.msra.mxu0 %v1628
    %2404 = vmatpush.bf16.xpose.msra.mxu0 %v1621
    %2405 = vmatpush.bf16.xpose.msra.mxu0 %v1614
    %2406 = vmatpush.bf16.xpose.msra.mxu0 %v1607
    %2407 = vmatpush.bf16.xpose.msra.mxu0 %v1600
    %2408 = vmatmul.bf16.gmra.mxu0 %v107
    %v2409 = vpop.f32.mrf.mxu0
    %v2410 = vadd.f32 %v2397, %v2409
    %v2411 = vpop.f32.mrf.mxu0
    %2412 = vdwg.mxu0
    %2413 = vmatpush.bf16.xpose.msra.mxu0 %v1650
    %2414 = vmatpush.bf16.xpose.msra.mxu0 %v1643
    %2415 = vmatpush.bf16.xpose.msra.mxu0 %v1636
    %2416 = vmatpush.bf16.xpose.msra.mxu0 %v1629
    %2417 = vmatpush.bf16.xpose.msra.mxu0 %v1622
    %2418 = vmatpush.bf16.xpose.msra.mxu0 %v1615
    %2419 = vmatpush.bf16.xpose.msra.mxu0 %v1608
    %2420 = vmatpush.bf16.xpose.msra.mxu0 %v1601
    %2421 = vmatmul.bf16.gmra.mxu0 %v108
    %v2422 = vpop.f32.mrf.mxu0
    %v2423 = vadd.f32 %v2410, %v2422
    %v2424 = vpop.f32.mrf.mxu0
    %2425 = vdwg.mxu0
    %2426 = vmatpush.bf16.xpose.msra.mxu0 %v1651
    %2427 = vmatpush.bf16.xpose.msra.mxu0 %v1644
    %2428 = vmatpush.bf16.xpose.msra.mxu0 %v1637
    %2429 = vmatpush.bf16.xpose.msra.mxu0 %v1630
    %2430 = vmatpush.bf16.xpose.msra.mxu0 %v1623
    %2431 = vmatpush.bf16.xpose.msra.mxu0 %v1616
    %2432 = vmatpush.bf16.xpose.msra.mxu0 %v1609
    %2433 = vmatpush.bf16.xpose.msra.mxu0 %v1602
    %2434 = vmatmul.bf16.gmra.mxu0 %v109
    %v2435 = vpop.f32.mrf.mxu0
    %v2436 = vadd.f32 %v2423, %v2435
    %v2437 = vpop.f32.mrf.mxu0
    %2438 = vdwg.mxu0
    %2439 = vmatpush.bf16.xpose.msra.mxu0 %v1652
    %2440 = vmatpush.bf16.xpose.msra.mxu0 %v1645
    %2441 = vmatpush.bf16.xpose.msra.mxu0 %v1638
    %2442 = vmatpush.bf16.xpose.msra.mxu0 %v1631
    %2443 = vmatpush.bf16.xpose.msra.mxu0 %v1624
    %2444 = vmatpush.bf16.xpose.msra.mxu0 %v1617
    %2445 = vmatpush.bf16.xpose.msra.mxu0 %v1610
    %2446 = vmatpush.bf16.xpose.msra.mxu0 %v1603
    %2447 = vmatmul.bf16.gmra.mxu0 %v110
    %v2448 = vpop.f32.mrf.mxu0
    %v2449 = vadd.f32 %v2436, %v2448
    %v2450 = vpop.f32.mrf.mxu0
    %2451 = vdwg.mxu0
    %2452 = vmatpush.bf16.xpose.msra.mxu0 %v1653
    %2453 = vmatpush.bf16.xpose.msra.mxu0 %v1646
    %2454 = vmatpush.bf16.xpose.msra.mxu0 %v1639
    %2455 = vmatpush.bf16.xpose.msra.mxu0 %v1632
    %2456 = vmatpush.bf16.xpose.msra.mxu0 %v1625
    %2457 = vmatpush.bf16.xpose.msra.mxu0 %v1618
    %2458 = vmatpush.bf16.xpose.msra.mxu0 %v1611
    %2459 = vmatpush.bf16.xpose.msra.mxu0 %v1604
    %2460 = vmatmul.bf16.gmra.mxu0 %v111
    %v2461 = vpop.f32.mrf.mxu0
    %v2462 = vadd.f32 %v2449, %v2461
    %v2463 = vpop.f32.mrf.mxu0
    %2464 = vdwg.mxu0
    %2465 = vmatpush.bf16.xpose.msra.mxu0 %v2262
    %2466 = vmatpush.bf16.xpose.msra.mxu0 %v2259
    %2467 = vmatpush.bf16.xpose.msra.mxu0 %v2256
    %2468 = vmatpush.bf16.xpose.msra.mxu0 %v2253
    %2469 = vmatpush.bf16.xpose.msra.mxu0 %v2250
    %2470 = vmatpush.bf16.xpose.msra.mxu0 %v2247
    %2471 = vmatpush.bf16.xpose.msra.mxu0 %v2244
    %2472 = vmatpush.bf16.xpose.msra.mxu0 %v2241
    %2473 = vmatmul.bf16.gmra.mxu0 %v2238
    %v2474 = vpop.f32.mrf.mxu0
    %v2475 = vadd.f32 %v2462, %v2474
    %v2476 = vpop.f32.mrf.mxu0
    %2477 = vdwg.mxu0
    %2478 = vmatpush.bf16.xpose.msra.mxu0 %v1704
    %2479 = vmatpush.bf16.xpose.msra.mxu0 %v1697
    %2480 = vmatpush.bf16.xpose.msra.mxu0 %v1690
    %2481 = vmatpush.bf16.xpose.msra.mxu0 %v1683
    %2482 = vmatpush.bf16.xpose.msra.mxu0 %v1676
    %2483 = vmatpush.bf16.xpose.msra.mxu0 %v1669
    %2484 = vmatpush.bf16.xpose.msra.mxu0 %v1662
    %2485 = vmatpush.bf16.xpose.msra.mxu0 %v1655
    %2486 = vmatmul.bf16.gmra.mxu0 %v106
    %v2487 = vpop.f32.mrf.mxu0
    %v2488 = vadd.f32 %v508, %v2487
    %v2489 = vpop.f32.mrf.mxu0
    %2490 = vdwg.mxu0
    %2491 = vmatpush.bf16.xpose.msra.mxu0 %v1705
    %2492 = vmatpush.bf16.xpose.msra.mxu0 %v1698
    %2493 = vmatpush.bf16.xpose.msra.mxu0 %v1691
    %2494 = vmatpush.bf16.xpose.msra.mxu0 %v1684
    %2495 = vmatpush.bf16.xpose.msra.mxu0 %v1677
    %2496 = vmatpush.bf16.xpose.msra.mxu0 %v1670
    %2497 = vmatpush.bf16.xpose.msra.mxu0 %v1663
    %2498 = vmatpush.bf16.xpose.msra.mxu0 %v1656
    %2499 = vmatmul.bf16.gmra.mxu0 %v107
    %v2500 = vpop.f32.mrf.mxu0
    %v2501 = vadd.f32 %v2488, %v2500
    %v2502 = vpop.f32.mrf.mxu0
    %2503 = vdwg.mxu0
    %2504 = vmatpush.bf16.xpose.msra.mxu0 %v1706
    %2505 = vmatpush.bf16.xpose.msra.mxu0 %v1699
    %2506 = vmatpush.bf16.xpose.msra.mxu0 %v1692
    %2507 = vmatpush.bf16.xpose.msra.mxu0 %v1685
    %2508 = vmatpush.bf16.xpose.msra.mxu0 %v1678
    %2509 = vmatpush.bf16.xpose.msra.mxu0 %v1671
    %2510 = vmatpush.bf16.xpose.msra.mxu0 %v1664
    %2511 = vmatpush.bf16.xpose.msra.mxu0 %v1657
    %2512 = vmatmul.bf16.gmra.mxu0 %v108
    %v2513 = vpop.f32.mrf.mxu0
    %v2514 = vadd.f32 %v2501, %v2513
    %v2515 = vpop.f32.mrf.mxu0
    %2516 = vdwg.mxu0
    %2517 = vmatpush.bf16.xpose.msra.mxu0 %v1707
    %2518 = vmatpush.bf16.xpose.msra.mxu0 %v1700
    %2519 = vmatpush.bf16.xpose.msra.mxu0 %v1693
    %2520 = vmatpush.bf16.xpose.msra.mxu0 %v1686
    %2521 = vmatpush.bf16.xpose.msra.mxu0 %v1679
    %2522 = vmatpush.bf16.xpose.msra.mxu0 %v1672
    %2523 = vmatpush.bf16.xpose.msra.mxu0 %v1665
    %2524 = vmatpush.bf16.xpose.msra.mxu0 %v1658
    %2525 = vmatmul.bf16.gmra.mxu0 %v109
    %v2526 = vpop.f32.mrf.mxu0
    %v2527 = vadd.f32 %v2514, %v2526
    %v2528 = vpop.f32.mrf.mxu0
    %2529 = vdwg.mxu0
    %2530 = vmatpush.bf16.xpose.msra.mxu0 %v1708
    %2531 = vmatpush.bf16.xpose.msra.mxu0 %v1701
    %2532 = vmatpush.bf16.xpose.msra.mxu0 %v1694
    %2533 = vmatpush.bf16.xpose.msra.mxu0 %v1687
    %2534 = vmatpush.bf16.xpose.msra.mxu0 %v1680
    %2535 = vmatpush.bf16.xpose.msra.mxu0 %v1673
    %2536 = vmatpush.bf16.xpose.msra.mxu0 %v1666
    %2537 = vmatpush.bf16.xpose.msra.mxu0 %v1659
    %2538 = vmatmul.bf16.gmra.mxu0 %v110
    %v2539 = vpop.f32.mrf.mxu0
    %v2540 = vadd.f32 %v2527, %v2539
    %v2541 = vpop.f32.mrf.mxu0
    %2542 = vdwg.mxu0
    %2543 = vmatpush.bf16.xpose.msra.mxu0 %v1709
    %2544 = vmatpush.bf16.xpose.msra.mxu0 %v1702
    %2545 = vmatpush.bf16.xpose.msra.mxu0 %v1695
    %2546 = vmatpush.bf16.xpose.msra.mxu0 %v1688
    %2547 = vmatpush.bf16.xpose.msra.mxu0 %v1681
    %2548 = vmatpush.bf16.xpose.msra.mxu0 %v1674
    %2549 = vmatpush.bf16.xpose.msra.mxu0 %v1667
    %2550 = vmatpush.bf16.xpose.msra.mxu0 %v1660
    %2551 = vmatmul.bf16.gmra.mxu0 %v111
    %v2552 = vpop.f32.mrf.mxu0
    %v2553 = vadd.f32 %v2540, %v2552
    %v2554 = vpop.f32.mrf.mxu0
    %2555 = vdwg.mxu0
    %2556 = vmatpush.bf16.xpose.msra.mxu0 %v2286
    %2557 = vmatpush.bf16.xpose.msra.mxu0 %v2283
    %2558 = vmatpush.bf16.xpose.msra.mxu0 %v2280
    %2559 = vmatpush.bf16.xpose.msra.mxu0 %v2277
    %2560 = vmatpush.bf16.xpose.msra.mxu0 %v2274
    %2561 = vmatpush.bf16.xpose.msra.mxu0 %v2271
    %2562 = vmatpush.bf16.xpose.msra.mxu0 %v2268
    %2563 = vmatpush.bf16.xpose.msra.mxu0 %v2265
    %2564 = vmatmul.bf16.gmra.mxu0 %v2238
    %v2565 = vpop.f32.mrf.mxu0
    %v2566 = vadd.f32 %v2553, %v2565
    %v2567 = vpop.f32.mrf.mxu0
    %2568 = vdwg.mxu0
    %2569 = vmatpush.bf16.xpose.msra.mxu0 %v1760
    %2570 = vmatpush.bf16.xpose.msra.mxu0 %v1753
    %2571 = vmatpush.bf16.xpose.msra.mxu0 %v1746
    %2572 = vmatpush.bf16.xpose.msra.mxu0 %v1739
    %2573 = vmatpush.bf16.xpose.msra.mxu0 %v1732
    %2574 = vmatpush.bf16.xpose.msra.mxu0 %v1725
    %2575 = vmatpush.bf16.xpose.msra.mxu0 %v1718
    %2576 = vmatpush.bf16.xpose.msra.mxu0 %v1711
    %2577 = vmatmul.bf16.gmra.mxu0 %v106
    %v2578 = vpop.f32.mrf.mxu0
    %v2579 = vadd.f32 %v509, %v2578
    %v2580 = vpop.f32.mrf.mxu0
    %2581 = vdwg.mxu0
    %2582 = vmatpush.bf16.xpose.msra.mxu0 %v1761
    %2583 = vmatpush.bf16.xpose.msra.mxu0 %v1754
    %2584 = vmatpush.bf16.xpose.msra.mxu0 %v1747
    %2585 = vmatpush.bf16.xpose.msra.mxu0 %v1740
    %2586 = vmatpush.bf16.xpose.msra.mxu0 %v1733
    %2587 = vmatpush.bf16.xpose.msra.mxu0 %v1726
    %2588 = vmatpush.bf16.xpose.msra.mxu0 %v1719
    %2589 = vmatpush.bf16.xpose.msra.mxu0 %v1712
    %2590 = vmatmul.bf16.gmra.mxu0 %v107
    %v2591 = vpop.f32.mrf.mxu0
    %v2592 = vadd.f32 %v2579, %v2591
    %v2593 = vpop.f32.mrf.mxu0
    %2594 = vdwg.mxu0
    %2595 = vmatpush.bf16.xpose.msra.mxu0 %v1762
    %2596 = vmatpush.bf16.xpose.msra.mxu0 %v1755
    %2597 = vmatpush.bf16.xpose.msra.mxu0 %v1748
    %2598 = vmatpush.bf16.xpose.msra.mxu0 %v1741
    %2599 = vmatpush.bf16.xpose.msra.mxu0 %v1734
    %2600 = vmatpush.bf16.xpose.msra.mxu0 %v1727
    %2601 = vmatpush.bf16.xpose.msra.mxu0 %v1720
    %2602 = vmatpush.bf16.xpose.msra.mxu0 %v1713
    %2603 = vmatmul.bf16.gmra.mxu0 %v108
    %v2604 = vpop.f32.mrf.mxu0
    %v2605 = vadd.f32 %v2592, %v2604
    %v2606 = vpop.f32.mrf.mxu0
    %2607 = vdwg.mxu0
    %2608 = vmatpush.bf16.xpose.msra.mxu0 %v1763
    %2609 = vmatpush.bf16.xpose.msra.mxu0 %v1756
    %2610 = vmatpush.bf16.xpose.msra.mxu0 %v1749
    %2611 = vmatpush.bf16.xpose.msra.mxu0 %v1742
    %2612 = vmatpush.bf16.xpose.msra.mxu0 %v1735
    %2613 = vmatpush.bf16.xpose.msra.mxu0 %v1728
    %2614 = vmatpush.bf16.xpose.msra.mxu0 %v1721
    %2615 = vmatpush.bf16.xpose.msra.mxu0 %v1714
    %2616 = vmatmul.bf16.gmra.mxu0 %v109
    %v2617 = vpop.f32.mrf.mxu0
    %v2618 = vadd.f32 %v2605, %v2617
    %v2619 = vpop.f32.mrf.mxu0
    %2620 = vdwg.mxu0
    %2621 = vmatpush.bf16.xpose.msra.mxu0 %v1764
    %2622 = vmatpush.bf16.xpose.msra.mxu0 %v1757
    %2623 = vmatpush.bf16.xpose.msra.mxu0 %v1750
    %2624 = vmatpush.bf16.xpose.msra.mxu0 %v1743
    %2625 = vmatpush.bf16.xpose.msra.mxu0 %v1736
    %2626 = vmatpush.bf16.xpose.msra.mxu0 %v1729
    %2627 = vmatpush.bf16.xpose.msra.mxu0 %v1722
    %2628 = vmatpush.bf16.xpose.msra.mxu0 %v1715
    %2629 = vmatmul.bf16.gmra.mxu0 %v110
    %v2630 = vpop.f32.mrf.mxu0
    %v2631 = vadd.f32 %v2618, %v2630
    %v2632 = vpop.f32.mrf.mxu0
    %2633 = vdwg.mxu0
    %2634 = vmatpush.bf16.xpose.msra.mxu0 %v1765
    %2635 = vmatpush.bf16.xpose.msra.mxu0 %v1758
    %2636 = vmatpush.bf16.xpose.msra.mxu0 %v1751
    %2637 = vmatpush.bf16.xpose.msra.mxu0 %v1744
    %2638 = vmatpush.bf16.xpose.msra.mxu0 %v1737
    %2639 = vmatpush.bf16.xpose.msra.mxu0 %v1730
    %2640 = vmatpush.bf16.xpose.msra.mxu0 %v1723
    %2641 = vmatpush.bf16.xpose.msra.mxu0 %v1716
    %2642 = vmatmul.bf16.gmra.mxu0 %v111
    %v2643 = vpop.f32.mrf.mxu0
    %v2644 = vadd.f32 %v2631, %v2643
    %v2645 = vpop.f32.mrf.mxu0
    %2646 = vdwg.mxu0
    %2647 = vmatpush.bf16.xpose.msra.mxu0 %v2310
    %2648 = vmatpush.bf16.xpose.msra.mxu0 %v2307
    %2649 = vmatpush.bf16.xpose.msra.mxu0 %v2304
    %2650 = vmatpush.bf16.xpose.msra.mxu0 %v2301
    %2651 = vmatpush.bf16.xpose.msra.mxu0 %v2298
    %2652 = vmatpush.bf16.xpose.msra.mxu0 %v2295
    %2653 = vmatpush.bf16.xpose.msra.mxu0 %v2292
    %2654 = vmatpush.bf16.xpose.msra.mxu0 %v2289
    %2655 = vmatmul.bf16.gmra.mxu0 %v2238
    %v2656 = vpop.f32.mrf.mxu0
    %v2657 = vadd.f32 %v2644, %v2656
    %v2658 = vpop.f32.mrf.mxu0
    %2659 = vdwg.mxu0
    %2660 = vmatpush.bf16.xpose.msra.mxu0 %v1816
    %2661 = vmatpush.bf16.xpose.msra.mxu0 %v1809
    %2662 = vmatpush.bf16.xpose.msra.mxu0 %v1802
    %2663 = vmatpush.bf16.xpose.msra.mxu0 %v1795
    %2664 = vmatpush.bf16.xpose.msra.mxu0 %v1788
    %2665 = vmatpush.bf16.xpose.msra.mxu0 %v1781
    %2666 = vmatpush.bf16.xpose.msra.mxu0 %v1774
    %2667 = vmatpush.bf16.xpose.msra.mxu0 %v1767
    %2668 = vmatmul.bf16.gmra.mxu0 %v106
    %v2669 = vpop.f32.mrf.mxu0
    %v2670 = vadd.f32 %v510, %v2669
    %v2671 = vpop.f32.mrf.mxu0
    %2672 = vdwg.mxu0
    %2673 = vmatpush.bf16.xpose.msra.mxu0 %v1817
    %2674 = vmatpush.bf16.xpose.msra.mxu0 %v1810
    %2675 = vmatpush.bf16.xpose.msra.mxu0 %v1803
    %2676 = vmatpush.bf16.xpose.msra.mxu0 %v1796
    %2677 = vmatpush.bf16.xpose.msra.mxu0 %v1789
    %2678 = vmatpush.bf16.xpose.msra.mxu0 %v1782
    %2679 = vmatpush.bf16.xpose.msra.mxu0 %v1775
    %2680 = vmatpush.bf16.xpose.msra.mxu0 %v1768
    %2681 = vmatmul.bf16.gmra.mxu0 %v107
    %v2682 = vpop.f32.mrf.mxu0
    %v2683 = vadd.f32 %v2670, %v2682
    %v2684 = vpop.f32.mrf.mxu0
    %2685 = vdwg.mxu0
    %2686 = vmatpush.bf16.xpose.msra.mxu0 %v1818
    %2687 = vmatpush.bf16.xpose.msra.mxu0 %v1811
    %2688 = vmatpush.bf16.xpose.msra.mxu0 %v1804
    %2689 = vmatpush.bf16.xpose.msra.mxu0 %v1797
    %2690 = vmatpush.bf16.xpose.msra.mxu0 %v1790
    %2691 = vmatpush.bf16.xpose.msra.mxu0 %v1783
    %2692 = vmatpush.bf16.xpose.msra.mxu0 %v1776
    %2693 = vmatpush.bf16.xpose.msra.mxu0 %v1769
    %2694 = vmatmul.bf16.gmra.mxu0 %v108
    %v2695 = vpop.f32.mrf.mxu0
    %v2696 = vadd.f32 %v2683, %v2695
    %v2697 = vpop.f32.mrf.mxu0
    %2698 = vdwg.mxu0
    %2699 = vmatpush.bf16.xpose.msra.mxu0 %v1819
    %2700 = vmatpush.bf16.xpose.msra.mxu0 %v1812
    %2701 = vmatpush.bf16.xpose.msra.mxu0 %v1805
    %2702 = vmatpush.bf16.xpose.msra.mxu0 %v1798
    %2703 = vmatpush.bf16.xpose.msra.mxu0 %v1791
    %2704 = vmatpush.bf16.xpose.msra.mxu0 %v1784
    %2705 = vmatpush.bf16.xpose.msra.mxu0 %v1777
    %2706 = vmatpush.bf16.xpose.msra.mxu0 %v1770
    %2707 = vmatmul.bf16.gmra.mxu0 %v109
    %v2708 = vpop.f32.mrf.mxu0
    %v2709 = vadd.f32 %v2696, %v2708
    %v2710 = vpop.f32.mrf.mxu0
    %2711 = vdwg.mxu0
    %2712 = vmatpush.bf16.xpose.msra.mxu0 %v1820
    %2713 = vmatpush.bf16.xpose.msra.mxu0 %v1813
    %2714 = vmatpush.bf16.xpose.msra.mxu0 %v1806
    %2715 = vmatpush.bf16.xpose.msra.mxu0 %v1799
    %2716 = vmatpush.bf16.xpose.msra.mxu0 %v1792
    %2717 = vmatpush.bf16.xpose.msra.mxu0 %v1785
    %2718 = vmatpush.bf16.xpose.msra.mxu0 %v1778
    %2719 = vmatpush.bf16.xpose.msra.mxu0 %v1771
    %2720 = vmatmul.bf16.gmra.mxu0 %v110
    %v2721 = vpop.f32.mrf.mxu0
    %v2722 = vadd.f32 %v2709, %v2721
    %v2723 = vpop.f32.mrf.mxu0
    %2724 = vdwg.mxu0
    %2725 = vmatpush.bf16.xpose.msra.mxu0 %v1821
    %2726 = vmatpush.bf16.xpose.msra.mxu0 %v1814
    %2727 = vmatpush.bf16.xpose.msra.mxu0 %v1807
    %2728 = vmatpush.bf16.xpose.msra.mxu0 %v1800
    %2729 = vmatpush.bf16.xpose.msra.mxu0 %v1793
    %2730 = vmatpush.bf16.xpose.msra.mxu0 %v1786
    %2731 = vmatpush.bf16.xpose.msra.mxu0 %v1779
    %2732 = vmatpush.bf16.xpose.msra.mxu0 %v1772
    %2733 = vmatmul.bf16.gmra.mxu0 %v111
    %v2734 = vpop.f32.mrf.mxu0
    %v2735 = vadd.f32 %v2722, %v2734
    %v2736 = vpop.f32.mrf.mxu0
    %2737 = vdwg.mxu0
    %2738 = vmatpush.bf16.xpose.msra.mxu0 %v2334
    %2739 = vmatpush.bf16.xpose.msra.mxu0 %v2331
    %2740 = vmatpush.bf16.xpose.msra.mxu0 %v2328
    %2741 = vmatpush.bf16.xpose.msra.mxu0 %v2325
    %2742 = vmatpush.bf16.xpose.msra.mxu0 %v2322
    %2743 = vmatpush.bf16.xpose.msra.mxu0 %v2319
    %2744 = vmatpush.bf16.xpose.msra.mxu0 %v2316
    %2745 = vmatpush.bf16.xpose.msra.mxu0 %v2313
    %2746 = vmatmul.bf16.gmra.mxu0 %v2238
    %v2747 = vpop.f32.mrf.mxu0
    %v2748 = vadd.f32 %v2735, %v2747
    %v2749 = vpop.f32.mrf.mxu0
    %2750 = vdwg.mxu0
    %2751 = vmatpush.bf16.xpose.msra.mxu0 %v1872
    %2752 = vmatpush.bf16.xpose.msra.mxu0 %v1865
    %2753 = vmatpush.bf16.xpose.msra.mxu0 %v1858
    %2754 = vmatpush.bf16.xpose.msra.mxu0 %v1851
    %2755 = vmatpush.bf16.xpose.msra.mxu0 %v1844
    %2756 = vmatpush.bf16.xpose.msra.mxu0 %v1837
    %2757 = vmatpush.bf16.xpose.msra.mxu0 %v1830
    %2758 = vmatpush.bf16.xpose.msra.mxu0 %v1823
    %2759 = vmatmul.bf16.gmra.mxu0 %v106
    %v2760 = vpop.f32.mrf.mxu0
    %v2761 = vadd.f32 %v511, %v2760
    %v2762 = vpop.f32.mrf.mxu0
    %2763 = vdwg.mxu0
    %2764 = vmatpush.bf16.xpose.msra.mxu0 %v1873
    %2765 = vmatpush.bf16.xpose.msra.mxu0 %v1866
    %2766 = vmatpush.bf16.xpose.msra.mxu0 %v1859
    %2767 = vmatpush.bf16.xpose.msra.mxu0 %v1852
    %2768 = vmatpush.bf16.xpose.msra.mxu0 %v1845
    %2769 = vmatpush.bf16.xpose.msra.mxu0 %v1838
    %2770 = vmatpush.bf16.xpose.msra.mxu0 %v1831
    %2771 = vmatpush.bf16.xpose.msra.mxu0 %v1824
    %2772 = vmatmul.bf16.gmra.mxu0 %v107
    %v2773 = vpop.f32.mrf.mxu0
    %v2774 = vadd.f32 %v2761, %v2773
    %v2775 = vpop.f32.mrf.mxu0
    %2776 = vdwg.mxu0
    %2777 = vmatpush.bf16.xpose.msra.mxu0 %v1874
    %2778 = vmatpush.bf16.xpose.msra.mxu0 %v1867
    %2779 = vmatpush.bf16.xpose.msra.mxu0 %v1860
    %2780 = vmatpush.bf16.xpose.msra.mxu0 %v1853
    %2781 = vmatpush.bf16.xpose.msra.mxu0 %v1846
    %2782 = vmatpush.bf16.xpose.msra.mxu0 %v1839
    %2783 = vmatpush.bf16.xpose.msra.mxu0 %v1832
    %2784 = vmatpush.bf16.xpose.msra.mxu0 %v1825
    %2785 = vmatmul.bf16.gmra.mxu0 %v108
    %v2786 = vpop.f32.mrf.mxu0
    %v2787 = vadd.f32 %v2774, %v2786
    %v2788 = vpop.f32.mrf.mxu0
    %2789 = vdwg.mxu0
    %2790 = vmatpush.bf16.xpose.msra.mxu0 %v1875
    %2791 = vmatpush.bf16.xpose.msra.mxu0 %v1868
    %2792 = vmatpush.bf16.xpose.msra.mxu0 %v1861
    %2793 = vmatpush.bf16.xpose.msra.mxu0 %v1854
    %2794 = vmatpush.bf16.xpose.msra.mxu0 %v1847
    %2795 = vmatpush.bf16.xpose.msra.mxu0 %v1840
    %2796 = vmatpush.bf16.xpose.msra.mxu0 %v1833
    %2797 = vmatpush.bf16.xpose.msra.mxu0 %v1826
    %2798 = vmatmul.bf16.gmra.mxu0 %v109
    %v2799 = vpop.f32.mrf.mxu0
    %v2800 = vadd.f32 %v2787, %v2799
    %v2801 = vpop.f32.mrf.mxu0
    %2802 = vdwg.mxu0
    %2803 = vmatpush.bf16.xpose.msra.mxu0 %v1876
    %2804 = vmatpush.bf16.xpose.msra.mxu0 %v1869
    %2805 = vmatpush.bf16.xpose.msra.mxu0 %v1862
    %2806 = vmatpush.bf16.xpose.msra.mxu0 %v1855
    %2807 = vmatpush.bf16.xpose.msra.mxu0 %v1848
    %2808 = vmatpush.bf16.xpose.msra.mxu0 %v1841
    %2809 = vmatpush.bf16.xpose.msra.mxu0 %v1834
    %2810 = vmatpush.bf16.xpose.msra.mxu0 %v1827
    %2811 = vmatmul.bf16.gmra.mxu0 %v110
    %v2812 = vpop.f32.mrf.mxu0
    %v2813 = vadd.f32 %v2800, %v2812
    %v2814 = vpop.f32.mrf.mxu0
    %2815 = vdwg.mxu0
    %2816 = vmatpush.bf16.xpose.msra.mxu0 %v1877
    %2817 = vmatpush.bf16.xpose.msra.mxu0 %v1870
    %2818 = vmatpush.bf16.xpose.msra.mxu0 %v1863
    %2819 = vmatpush.bf16.xpose.msra.mxu0 %v1856
    %2820 = vmatpush.bf16.xpose.msra.mxu0 %v1849
    %2821 = vmatpush.bf16.xpose.msra.mxu0 %v1842
    %2822 = vmatpush.bf16.xpose.msra.mxu0 %v1835
    %2823 = vmatpush.bf16.xpose.msra.mxu0 %v1828
    %2824 = vmatmul.bf16.gmra.mxu0 %v111
    %v2825 = vpop.f32.mrf.mxu0
    %v2826 = vadd.f32 %v2813, %v2825
    %v2827 = vpop.f32.mrf.mxu0
    %2828 = vdwg.mxu0
    %2829 = vmatpush.bf16.xpose.msra.mxu0 %v2358
    %2830 = vmatpush.bf16.xpose.msra.mxu0 %v2355
    %2831 = vmatpush.bf16.xpose.msra.mxu0 %v2352
    %2832 = vmatpush.bf16.xpose.msra.mxu0 %v2349
    %2833 = vmatpush.bf16.xpose.msra.mxu0 %v2346
    %2834 = vmatpush.bf16.xpose.msra.mxu0 %v2343
    %2835 = vmatpush.bf16.xpose.msra.mxu0 %v2340
    %2836 = vmatpush.bf16.xpose.msra.mxu0 %v2337
    %2837 = vmatmul.bf16.gmra.mxu0 %v2238
    %v2838 = vpop.f32.mrf.mxu0
    %v2839 = vadd.f32 %v2826, %v2838
    %v2840 = vpop.f32.mrf.mxu0
    %2841 = vdwg.mxu0
    %2842 = vmatpush.bf16.xpose.msra.mxu0 %v1928
    %2843 = vmatpush.bf16.xpose.msra.mxu0 %v1921
    %2844 = vmatpush.bf16.xpose.msra.mxu0 %v1914
    %2845 = vmatpush.bf16.xpose.msra.mxu0 %v1907
    %2846 = vmatpush.bf16.xpose.msra.mxu0 %v1900
    %2847 = vmatpush.bf16.xpose.msra.mxu0 %v1893
    %2848 = vmatpush.bf16.xpose.msra.mxu0 %v1886
    %2849 = vmatpush.bf16.xpose.msra.mxu0 %v1879
    %2850 = vmatmul.bf16.gmra.mxu0 %v106
    %v2851 = vpop.f32.mrf.mxu0
    %v2852 = vadd.f32 %v512, %v2851
    %v2853 = vpop.f32.mrf.mxu0
    %2854 = vdwg.mxu0
    %2855 = vmatpush.bf16.xpose.msra.mxu0 %v1929
    %2856 = vmatpush.bf16.xpose.msra.mxu0 %v1922
    %2857 = vmatpush.bf16.xpose.msra.mxu0 %v1915
    %2858 = vmatpush.bf16.xpose.msra.mxu0 %v1908
    %2859 = vmatpush.bf16.xpose.msra.mxu0 %v1901
    %2860 = vmatpush.bf16.xpose.msra.mxu0 %v1894
    %2861 = vmatpush.bf16.xpose.msra.mxu0 %v1887
    %2862 = vmatpush.bf16.xpose.msra.mxu0 %v1880
    %2863 = vmatmul.bf16.gmra.mxu0 %v107
    %v2864 = vpop.f32.mrf.mxu0
    %v2865 = vadd.f32 %v2852, %v2864
    %v2866 = vpop.f32.mrf.mxu0
    %2867 = vdwg.mxu0
    %2868 = vmatpush.bf16.xpose.msra.mxu0 %v1930
    %2869 = vmatpush.bf16.xpose.msra.mxu0 %v1923
    %2870 = vmatpush.bf16.xpose.msra.mxu0 %v1916
    %2871 = vmatpush.bf16.xpose.msra.mxu0 %v1909
    %2872 = vmatpush.bf16.xpose.msra.mxu0 %v1902
    %2873 = vmatpush.bf16.xpose.msra.mxu0 %v1895
    %2874 = vmatpush.bf16.xpose.msra.mxu0 %v1888
    %2875 = vmatpush.bf16.xpose.msra.mxu0 %v1881
    %2876 = vmatmul.bf16.gmra.mxu0 %v108
    %v2877 = vpop.f32.mrf.mxu0
    %v2878 = vadd.f32 %v2865, %v2877
    %v2879 = vpop.f32.mrf.mxu0
    %2880 = vdwg.mxu0
    %2881 = vmatpush.bf16.xpose.msra.mxu0 %v1931
    %2882 = vmatpush.bf16.xpose.msra.mxu0 %v1924
    %2883 = vmatpush.bf16.xpose.msra.mxu0 %v1917
    %2884 = vmatpush.bf16.xpose.msra.mxu0 %v1910
    %2885 = vmatpush.bf16.xpose.msra.mxu0 %v1903
    %2886 = vmatpush.bf16.xpose.msra.mxu0 %v1896
    %2887 = vmatpush.bf16.xpose.msra.mxu0 %v1889
    %2888 = vmatpush.bf16.xpose.msra.mxu0 %v1882
    %2889 = vmatmul.bf16.gmra.mxu0 %v109
    %v2890 = vpop.f32.mrf.mxu0
    %v2891 = vadd.f32 %v2878, %v2890
    %v2892 = vpop.f32.mrf.mxu0
    %2893 = vdwg.mxu0
    %2894 = vmatpush.bf16.xpose.msra.mxu0 %v1932
    %2895 = vmatpush.bf16.xpose.msra.mxu0 %v1925
    %2896 = vmatpush.bf16.xpose.msra.mxu0 %v1918
    %2897 = vmatpush.bf16.xpose.msra.mxu0 %v1911
    %2898 = vmatpush.bf16.xpose.msra.mxu0 %v1904
    %2899 = vmatpush.bf16.xpose.msra.mxu0 %v1897
    %2900 = vmatpush.bf16.xpose.msra.mxu0 %v1890
    %2901 = vmatpush.bf16.xpose.msra.mxu0 %v1883
    %2902 = vmatmul.bf16.gmra.mxu0 %v110
    %v2903 = vpop.f32.mrf.mxu0
    %v2904 = vadd.f32 %v2891, %v2903
    %v2905 = vpop.f32.mrf.mxu0
    %2906 = vdwg.mxu0
    %2907 = vmatpush.bf16.xpose.msra.mxu0 %v1933
    %2908 = vmatpush.bf16.xpose.msra.mxu0 %v1926
    %2909 = vmatpush.bf16.xpose.msra.mxu0 %v1919
    %2910 = vmatpush.bf16.xpose.msra.mxu0 %v1912
    %2911 = vmatpush.bf16.xpose.msra.mxu0 %v1905
    %2912 = vmatpush.bf16.xpose.msra.mxu0 %v1898
    %2913 = vmatpush.bf16.xpose.msra.mxu0 %v1891
    %2914 = vmatpush.bf16.xpose.msra.mxu0 %v1884
    %2915 = vmatmul.bf16.gmra.mxu0 %v111
    %v2916 = vpop.f32.mrf.mxu0
    %v2917 = vadd.f32 %v2904, %v2916
    %v2918 = vpop.f32.mrf.mxu0
    %2919 = vdwg.mxu0
    %2920 = vmatpush.bf16.xpose.msra.mxu0 %v2382
    %2921 = vmatpush.bf16.xpose.msra.mxu0 %v2379
    %2922 = vmatpush.bf16.xpose.msra.mxu0 %v2376
    %2923 = vmatpush.bf16.xpose.msra.mxu0 %v2373
    %2924 = vmatpush.bf16.xpose.msra.mxu0 %v2370
    %2925 = vmatpush.bf16.xpose.msra.mxu0 %v2367
    %2926 = vmatpush.bf16.xpose.msra.mxu0 %v2364
    %2927 = vmatpush.bf16.xpose.msra.mxu0 %v2361
    %2928 = vmatmul.bf16.gmra.mxu0 %v2238
    %v2929 = vpop.f32.mrf.mxu0
    %v2930 = vadd.f32 %v2917, %v2929
    %v2931 = vpop.f32.mrf.mxu0
    %2932 = vdwg.mxu0
    %2933 = vmatpush.bf16.xpose.msra.mxu0 0
    %2934 = vmatpush.bf16.xpose.msra.mxu0 0
    %2935 = vmatpush.bf16.xpose.msra.mxu0 0
    %2936 = vmatpush.bf16.xpose.msra.mxu0 0
    %2937 = vmatpush.bf16.xpose.msra.mxu0 0
    %2938 = vmatpush.bf16.xpose.msra.mxu0 0
    %2939 = vmatpush.bf16.xpose.msra.mxu0 0
    %2940 = vmatpush.bf16.xpose.msra.mxu0 %v1935
    %2941 = vmatmul.bf16.gmra.mxu0 %v106
    %v2942 = vpop.f32.mrf.mxu0
    %v2943 = vadd.f32 %v513, %v2942
    %v2944 = vpop.f32.mrf.mxu0
    %2945 = vdwg.mxu0
    %2946 = vmatpush.bf16.xpose.msra.mxu0 0
    %2947 = vmatpush.bf16.xpose.msra.mxu0 0
    %2948 = vmatpush.bf16.xpose.msra.mxu0 0
    %2949 = vmatpush.bf16.xpose.msra.mxu0 0
    %2950 = vmatpush.bf16.xpose.msra.mxu0 0
    %2951 = vmatpush.bf16.xpose.msra.mxu0 0
    %2952 = vmatpush.bf16.xpose.msra.mxu0 0
    %2953 = vmatpush.bf16.xpose.msra.mxu0 %v1936
    %2954 = vmatmul.bf16.gmra.mxu0 %v107
    %v2955 = vpop.f32.mrf.mxu0
    %v2956 = vadd.f32 %v2943, %v2955
    %v2957 = vpop.f32.mrf.mxu0
    %2958 = vdwg.mxu0
    %2959 = vmatpush.bf16.xpose.msra.mxu0 0
    %2960 = vmatpush.bf16.xpose.msra.mxu0 0
    %2961 = vmatpush.bf16.xpose.msra.mxu0 0
    %2962 = vmatpush.bf16.xpose.msra.mxu0 0
    %2963 = vmatpush.bf16.xpose.msra.mxu0 0
    %2964 = vmatpush.bf16.xpose.msra.mxu0 0
    %2965 = vmatpush.bf16.xpose.msra.mxu0 0
    %2966 = vmatpush.bf16.xpose.msra.mxu0 %v1937
    %2967 = vmatmul.bf16.gmra.mxu0 %v108
    %v2968 = vpop.f32.mrf.mxu0
    %v2969 = vadd.f32 %v2956, %v2968
    %v2970 = vpop.f32.mrf.mxu0
    %2971 = vdwg.mxu0
    %2972 = vmatpush.bf16.xpose.msra.mxu0 0
    %2973 = vmatpush.bf16.xpose.msra.mxu0 0
    %2974 = vmatpush.bf16.xpose.msra.mxu0 0
    %2975 = vmatpush.bf16.xpose.msra.mxu0 0
    %2976 = vmatpush.bf16.xpose.msra.mxu0 0
    %2977 = vmatpush.bf16.xpose.msra.mxu0 0
    %2978 = vmatpush.bf16.xpose.msra.mxu0 0
    %2979 = vmatpush.bf16.xpose.msra.mxu0 %v1938
    %2980 = vmatmul.bf16.gmra.mxu0 %v109
    %v2981 = vpop.f32.mrf.mxu0
    %v2982 = vadd.f32 %v2969, %v2981
    %v2983 = vpop.f32.mrf.mxu0
    %2984 = vdwg.mxu0
    %2985 = vmatpush.bf16.xpose.msra.mxu0 0
    %2986 = vmatpush.bf16.xpose.msra.mxu0 0
    %2987 = vmatpush.bf16.xpose.msra.mxu0 0
    %2988 = vmatpush.bf16.xpose.msra.mxu0 0
    %2989 = vmatpush.bf16.xpose.msra.mxu0 0
    %2990 = vmatpush.bf16.xpose.msra.mxu0 0
    %2991 = vmatpush.bf16.xpose.msra.mxu0 0
    %2992 = vmatpush.bf16.xpose.msra.mxu0 %v1939
    %2993 = vmatmul.bf16.gmra.mxu0 %v110
    %v2994 = vpop.f32.mrf.mxu0
    %v2995 = vadd.f32 %v2982, %v2994
    %v2996 = vpop.f32.mrf.mxu0
    %2997 = vdwg.mxu0
    %2998 = vmatpush.bf16.xpose.msra.mxu0 0
    %2999 = vmatpush.bf16.xpose.msra.mxu0 0
    %3000 = vmatpush.bf16.xpose.msra.mxu0 0
    %3001 = vmatpush.bf16.xpose.msra.mxu0 0
    %3002 = vmatpush.bf16.xpose.msra.mxu0 0
    %3003 = vmatpush.bf16.xpose.msra.mxu0 0
    %3004 = vmatpush.bf16.xpose.msra.mxu0 0
    %3005 = vmatpush.bf16.xpose.msra.mxu0 %v1940
    %3006 = vmatmul.bf16.gmra.mxu0 %v111
    %v3007 = vpop.f32.mrf.mxu0
    %v3008 = vadd.f32 %v2995, %v3007
    %v3009 = vpop.f32.mrf.mxu0
    %3010 = vdwg.mxu0
    %3011 = vmatpush.bf16.xpose.msra.mxu0 0
    %3012 = vmatpush.bf16.xpose.msra.mxu0 0
    %3013 = vmatpush.bf16.xpose.msra.mxu0 0
    %3014 = vmatpush.bf16.xpose.msra.mxu0 0
    %3015 = vmatpush.bf16.xpose.msra.mxu0 0
    %3016 = vmatpush.bf16.xpose.msra.mxu0 0
    %3017 = vmatpush.bf16.xpose.msra.mxu0 0
    %3018 = vmatpush.bf16.xpose.msra.mxu0 %v2385
    %3019 = vmatmul.bf16.gmra.mxu0 %v2238
    %v3020 = vpop.f32.mrf.mxu0
    %v3021 = vadd.f32 %v3008, %v3020
    %v3022 = vpop.f32.mrf.mxu0
    %3023 = vdwg.mxu0
    %v3031 = vrot.slane %v2566, 6
    %v3032 = vrot.slane %v2657, 4
    %v3033 = vrot.slane %v2748, 2
    %v3034 = vrot.slane %v2930, 6
    %v3035 = vrot.slane %v3021, 4
    %vm3036 = vcmask 1041408
    %v3037 = vsel %vm3036, %v2475, %v3031
    %vm3038 = vcmask 1045508
    %v3039 = vsel %vm3038, %v3032, %v3033
    %vm3040 = vcmask 1043456
    %v3041 = vsel %vm3040, %v3037, %v3039
    %v3042 = vsel %vm3036, %v2839, %v3034
    %v3043 = vsel %vm3040, %v3042, %v3035
    %vm3044 = vcmask 1043458
    %v3045 = vsel %vm3044, %v2475, %v3031
    %vm3046 = vcmask 1045504
    %v3047 = vsel %vm3046, %v3033, %v3032
    %vm3048 = vcmask 1045506
    %v3049 = vsel %vm3048, %v3045, %v3047
    %v3050 = vrot.slane %v3049, 2
    %v3051 = vsel %vm3044, %v2839, %v3034
    %v3052 = vsel %vm3048, %v3051, %v3035
    %v3053 = vrot.slane %v3052, 2
    %v3054 = vsel %vm3038, %v2475, %v3031
    %v3055 = vsel %vm3036, %v3032, %v3033
    %v3056 = vsel %vm3040, %v3055, %v3054
    %v3057 = vrot.slane %v3056, 4
    %v3058 = vsel %vm3038, %v2839, %v3034
    %v3059 = vsel %vm3040, %v3035, %v3058
    %v3060 = vrot.slane %v3059, 4
    %v3061 = vsel %vm3046, %v3031, %v2475
    %v3062 = vsel %vm3044, %v3032, %v3033
    %v3063 = vsel %vm3048, %v3062, %v3061
    %v3064 = vrot.slane %v3063, 6
    %v3065 = vsel %vm3046, %v3034, %v2839
    %v3066 = vsel %vm3048, %v3035, %v3065
    %v3067 = vrot.slane %v3066, 6
    %3076 = vst [vmem:[#allocation8] sm:$0xff] %v3041
    %vm3077 = vmor %vm3044, %vm3036
    %vm3078 = vcmask 128004
    %vm3079 = vmor %vm3078, %vm3077
    %3080 = vst.msk [vmem:[#allocation8 + $0x8] sm:$0x3f] %vm3079, %v3043
    %3081 = vst [vmem:[#allocation8 + $0xe] sm:$0xff] %v3050
    %3082 = vst.msk [vmem:[#allocation8 + $0x16] sm:$0x3f] %vm3079, %v3053
    %3083 = vst [vmem:[#allocation8 + $0x1c] sm:$0xff] %v3057
    %3084 = vst.msk [vmem:[#allocation8 + $0x24] sm:$0x3f] %vm3079, %v3060
    %3085 = vst [vmem:[#allocation8 + $0x2a] sm:$0xff] %v3064
    %3086 = vst.msk [vmem:[#allocation8 + $0x32] sm:$0x3f] %vm3079, %v3067
    // Predicated region
    $region26: #{tpu_custom_call.1} parent=1 // pred_check
      _
    $region27: #{tpu_custom_call.1} parent=1 // pred_check_branch
      %3088 = sbr.rel (0) target = $region29
    $region28: #{tpu_custom_call.1} parent=1 // pred_region
      %3090 = vsyncadd [#allocation4], 672
      %s3091 = sshll.u32 [#allocation8], 4
      %s3092 = int_to_ptr.vmem [resolvable:$true] %s3091
      %s3093 = sshll.u32 %s3, 4
      %s3094 = int_to_ptr.hbm [resolvable:$true] %s3093
      %3099 = dma.vmem_to_hbm [thread:$0]  %s3092, 224, %s3094, [#allocation4], 224, 224, 14
    $region29: #{tpu_custom_call.1} parent=1 // pred_fallthru
      _
    // Predicated region
    $region30: #{tpu_custom_call.1} parent=1 // pred_check
      _
    $region31: #{tpu_custom_call.1} parent=1 // pred_check_branch
      %3101 = sbr.rel (0) target = $region33
    $region32: #{tpu_custom_call.1} parent=1 // pred_region
      %3103 = dma.done [#allocation4], 896
    $region33: #{tpu_custom_call.1} parent=1 // pred_fallthru
      _
    %3104 = vsyncpa [#allocation3], 1
    %3105 = vsyncpa [#allocation6], 1
    %3106 = vsyncpa [#allocation4], 1

</llo_original>
